<compile_context>
chip_gen: v6e
topology: v6e:2x2x1
jax: 0.10.0
libtpu: 0.0.40
codegen_flags: <defaults>
</compile_context>

<pallas_src>
import functools

import jax
import jax.numpy as jnp
from jax import lax
from jax.experimental import pallas as pl
from jax.experimental.pallas import tpu as pltpu


# ---------------------------------------------------------------------------
# Pallas kernel: fused 3x3 conv + SiLU + fused latent heads + sampling
# ---------------------------------------------------------------------------
def stage1_kernel(x_ref, wenc_ref, benc_ref, wh_ref, bh_ref, eps_ref, z_ref,
                  *, h_img, w_img, latent, bt):
    """One batch-tile (Bt images) per grid step, channels-major layout.

    x_ref   : (Bt, C, FLAT)   bf16  zero-padded images, spatial dims flattened
    wenc_ref: (HID, 9*C)      bf16  3x3 conv weight, columns ordered tap-major (ky,kx,c)
    benc_ref: (HID, 1)        f32
    wh_ref  : (2L, HID)       bf16  fused [mu | log_var] 1x1 heads
    bh_ref  : (2L, 1)         f32
    eps_ref : (Bt, L, PW)     bf16  reparameterization noise (wide, per-image layout)
    z_ref   : (Bt, L, H*W)    f32   compact output (junk columns already dropped)
    """
    wp = w_img + 2                       # padded image width
    pw = h_img * wp                      # wide output columns per image (incl. junk cols)

    for b in range(bt):                  # static unroll over the batch tile
        # ---- build the K=36 im2col operand from 9 shifted lane slices -------------
        x_b = x_ref[b].astype(jnp.float32)          # (C, FLAT), f32 for safe relayout
        cols = []
        for tap in range(9):
            ky, kx = tap // 3, tap % 3
            off = ky * wp + kx                      # static lane offset for this tap
            cols.append(x_b[:, off:off + pw])       # (C, PW)
        xcol = jnp.concatenate(cols, axis=0).astype(jnp.bfloat16)   # (9C, PW)

        # ---- 3x3 conv as a single K=36 dot + SiLU ---------------------------------
        h = jnp.dot(wenc_ref[...], xcol, preferred_element_type=jnp.float32)
        h = h + benc_ref[...]                       # (HID, PW) f32
        h = h * jax.nn.sigmoid(h)                   # SiLU (EUP exp), f32

        # ---- fused 1x1 heads: rows [0:L] = mu, rows [L:2L] = log_var --------------
        heads = jnp.dot(wh_ref[...], h.astype(jnp.bfloat16),
                        preferred_element_type=jnp.float32) + bh_ref[...]
        z_mu = heads[:latent]                       # (L, PW)
        z_log_var = jnp.clip(heads[latent:], -30.0, 20.0)
        z_sigma = jnp.exp(0.5 * z_log_var)

        # ---- reparameterization in the wide layout ---------------------------------
        z_wide = z_mu + eps_ref[b].astype(jnp.float32) * z_sigma     # (L, PW) f32

        # ---- drop the 2 junk columns per row -> lane-dense (L, H*W) store ----------
        z_img = jnp.concatenate(
            [z_wide[:, r * wp:r * wp + w_img] for r in range(h_img)], axis=1)
        z_ref[b] = z_img.astype(z_ref.dtype)        # (L, H*W), 256 = 2*128 lanes


# ---------------------------------------------------------------------------
# Wrapper
# ---------------------------------------------------------------------------
def _pick_batch_tile(n, max_bt=4):
    """Largest divisor of n (<= max_bt) that still leaves >=2 grid steps (v7x: 2 TCs)."""
    best = 1
    for bt in range(1, min(max_bt, n) + 1):
        if n % bt == 0 and n // bt >= 2:
            best = bt
    return best


@jax.jit
def stage1_forward(x_nchw, kparams, eps_wide):
    """x_nchw: (N, C_in, H, W) -> z: (N, LATENT, H, W) (stays NCHW throughout)."""
    n, c_in, h, w = x_nchw.shape
    hid = kparams["b_enc"].shape[0]
    latent = kparams["b_heads"].shape[0] // 2
    wp = w + 2
    pw = h * wp                       # wide output columns per image (incl. junk)
    flat = (h + 3) * wp               # pad rows (1,2) so the largest shifted slice fits
    bt = _pick_batch_tile(n)
    nb = n // bt

    # Cast to bf16 first, then pad + flatten spatial dims: one fused pass, no transposes.
    xp = jnp.pad(x_nchw.astype(jnp.bfloat16), ((0, 0), (0, 0), (1, 2), (1, 1)))
    x_flat = xp.reshape(n, c_in, flat)
    eps_flat = eps_wide.reshape(n, latent, pw)      # bf16, wide per-image layout

    kernel = functools.partial(stage1_kernel, h_img=h, w_img=w, latent=latent, bt=bt)
    z = pl.pallas_call(
        kernel,
        out_shape=jax.ShapeDtypeStruct((n, latent, h * w), jnp.float32),
        grid_spec=pltpu.PrefetchScalarGridSpec(
            num_scalar_prefetch=0,
            grid=(nb,),
            in_specs=[
                pl.BlockSpec((bt, c_in, flat), lambda i: (i, 0, 0)),        # x (Bt images)
                pl.BlockSpec((hid, 9 * c_in), lambda i: (0, 0)),            # fused conv W
                pl.BlockSpec((hid, 1), lambda i: (0, 0)),                   # conv bias
                pl.BlockSpec((2 * latent, hid), lambda i: (0, 0)),          # fused head W
                pl.BlockSpec((2 * latent, 1), lambda i: (0, 0)),            # fused head b
                pl.BlockSpec((bt, latent, pw), lambda i: (i, 0, 0)),        # eps (bf16)
            ],
            out_specs=pl.BlockSpec((bt, latent, h * w), lambda i: (i, 0, 0)),
        ),
        compiler_params=pltpu.CompilerParams(
            dimension_semantics=("parallel",),
            vmem_limit_bytes=32 * 1024 * 1024),
    )(x_flat, kparams["w_enc"], kparams["b_enc"],
      kparams["w_heads"], kparams["b_heads"], eps_flat)

    # Output is already compact and channels-major: metadata-only reshape.
    return z.reshape(n, latent, h, w)


# ---------------------------------------------------------------------------
# Parameters: PyTorch-layout init + packing into the kernel layout
# ---------------------------------------------------------------------------
def init_torch_params(key, c_in=4, hid=32, latent=8):
    k = jax.random.split(key, 6)
    return {
        "w_conv": 0.1 * jax.random.normal(k[0], (hid, c_in, 3, 3), jnp.float32),
        "b_conv": 0.05 * jax.random.normal(k[1], (hid,), jnp.float32),
        "w_mu":   0.1 * jax.random.normal(k[2], (latent, hid), jnp.float32),
        "b_mu":   0.05 * jax.random.normal(k[3], (latent,), jnp.float32),
        "w_ls":   0.1 * jax.random.normal(k[4], (latent, hid), jnp.float32),
        "b_ls":   0.05 * jax.random.normal(k[5], (latent,), jnp.float32),
    }


def pack_params(pt):
    hid, c_in, _, _ = pt["w_conv"].shape
    latent = pt["w_mu"].shape[0]
    # (O, C, KH, KW) -> (O, KH, KW, C) -> (O, 9*C); column index = (ky*3 + kx)*C + c,
    # matching the tap-major / channel-minor row order of the in-kernel im2col operand.
    w_enc = jnp.transpose(pt["w_conv"], (0, 2, 3, 1)).reshape(hid, 9 * c_in)
    w_heads = jnp.concatenate([pt["w_mu"], pt["w_ls"]], axis=0)      # (2L, HID)
    b_heads = jnp.concatenate([pt["b_mu"], pt["b_ls"]], axis=0)      # (2L,)
    return {
        "w_enc": w_enc.astype(jnp.bfloat16),
        "b_enc": pt["b_conv"].reshape(hid, 1).astype(jnp.float32),
        "w_heads": w_heads.astype(jnp.bfloat16),
        "b_heads": b_heads.reshape(2 * latent, 1).astype(jnp.float32),
    }


# ---------------------------------------------------------------------------
# Pure-JAX reference (independent formulation: lax.conv on the PyTorch weights)
# ---------------------------------------------------------------------------
def stage1_ref(x_nchw, pt, eps_nchw):
    xb = x_nchw.astype(jnp.bfloat16)
    wb = pt["w_conv"].astype(jnp.bfloat16)
    h = lax.conv_general_dilated(
        xb, wb, window_strides=(1, 1), padding=((1, 1), (1, 1)),
        dimension_numbers=("NCHW", "OIHW", "NCHW"),
        preferred_element_type=jnp.float32)
    h = h + pt["b_conv"].reshape(1, -1, 1, 1)
    h = h * jax.nn.sigmoid(h)
    hb = h.astype(jnp.bfloat16)
    mu = jnp.einsum("nchw,lc->nlhw", hb, pt["w_mu"].astype(jnp.bfloat16),
                    preferred_element_type=jnp.float32) + pt["b_mu"].reshape(1, -1, 1, 1)
    lv = jnp.einsum("nchw,lc->nlhw", hb, pt["w_ls"].astype(jnp.bfloat16),
                    preferred_element_type=jnp.float32) + pt["b_ls"].reshape(1, -1, 1, 1)
    lv = jnp.clip(lv, -30.0, 20.0)
    sigma = jnp.exp(0.5 * lv)
    return mu + eps_nchw * sigma


if __name__ == "__main__":
    N, C_IN, H, W = 8, 4, 16, 16       # N=8 -> Bt=4, 2 parallel grid steps
    HID, LATENT = 32, 8

    key = jax.random.PRNGKey(0)
    kx_, kp_, ke_ = jax.random.split(key, 3)

    x = jax.random.normal(kx_, (N, C_IN, H, W), jnp.float32)
    pt_params = init_torch_params(kp_, c_in=C_IN, hid=HID, latent=LATENT)
    kparams = pack_params(pt_params)
    # eps corresponds to torch.randn_like(z_sigma); generated in the kernel's wide per-image
    # layout and stored as bf16 (review: halve the largest HBM input stream).
    eps_wide = jax.random.normal(
        ke_, (N, LATENT, H, W + 2), jnp.float32).astype(jnp.bfloat16)

    z = stage1_forward(x, kparams, eps_wide)
    z = jax.block_until_ready(z)

    z_ref = stage1_ref(x, pt_params, eps_wide[:, :, :, :W].astype(jnp.float32))
    assert z.shape == (N, LATENT, H, W)
    max_diff = float(jnp.max(jnp.abs(z - z_ref)))
    assert jnp.allclose(z, z_ref, atol=1e-2, rtol=1e-2), \
        f"mismatch vs reference: max |diff| = {max_diff}"

    print("KERNEL_OK")
</pallas_src>

<mosaic_0001>
module attributes {stable_mosaic.version = 11 : i64} {
  func.func @stage1_kernel(%arg0: i32, %arg1: memref<4x4x342xbf16, #tpu.memory_space<vmem>>, %arg2: memref<32x36xbf16, #tpu.memory_space<vmem>>, %arg3: memref<32x1xf32, #tpu.memory_space<vmem>>, %arg4: memref<16x32xbf16, #tpu.memory_space<vmem>>, %arg5: memref<16x1xf32, #tpu.memory_space<vmem>>, %arg6: memref<4x8x288xbf16, #tpu.memory_space<vmem>>, %arg7: memref<4x8x256xf32, #tpu.memory_space<vmem>>) attributes {dimension_semantics = [#tpu.dimension_semantics<parallel>], iteration_bounds = array<i64: 2>, scalar_prefetch = 0 : i64, scratch_operands = 0 : i64, tpu.core_type = #tpu.core_type<tc>, window_params = [{transform_indices = @transform_0, window_bounds = array<i64: 4, 4, 342>}, {pipeline_mode = #tpu.pipeline_mode<synchronous>, transform_indices = @transform_1, window_bounds = array<i64: 32, 36>}, {pipeline_mode = #tpu.pipeline_mode<synchronous>, transform_indices = @transform_2, window_bounds = array<i64: 32, 1>}, {pipeline_mode = #tpu.pipeline_mode<synchronous>, transform_indices = @transform_3, window_bounds = array<i64: 16, 32>}, {pipeline_mode = #tpu.pipeline_mode<synchronous>, transform_indices = @transform_4, window_bounds = array<i64: 16, 1>}, {transform_indices = @transform_5, window_bounds = array<i64: 4, 8, 288>}, {transform_indices = @transform_6, window_bounds = array<i64: 4, 8, 256>}]} {
    %c0 = arith.constant 0 : index
    %c0_0 = arith.constant 0 : index
    %c0_1 = arith.constant 0 : index
    %0 = vector.load %arg1[%c0, %c0_0, %c0_1] : memref<4x4x342xbf16, #tpu.memory_space<vmem>>, vector<1x4x342xbf16>
    %1 = vector.shape_cast %0 : vector<1x4x342xbf16> to vector<4x342xbf16>
    %2 = arith.extf %1 : vector<4x342xbf16> to vector<4x342xf32>
    %3 = vector.extract_strided_slice %2 {offsets = [0, 0], sizes = [4, 288], strides = [1, 1]} : vector<4x342xf32> to vector<4x288xf32>
    %4 = vector.extract_strided_slice %2 {offsets = [0, 1], sizes = [4, 288], strides = [1, 1]} : vector<4x342xf32> to vector<4x288xf32>
    %5 = vector.extract_strided_slice %2 {offsets = [0, 2], sizes = [4, 288], strides = [1, 1]} : vector<4x342xf32> to vector<4x288xf32>
    %6 = vector.extract_strided_slice %2 {offsets = [0, 18], sizes = [4, 288], strides = [1, 1]} : vector<4x342xf32> to vector<4x288xf32>
    %7 = vector.extract_strided_slice %2 {offsets = [0, 19], sizes = [4, 288], strides = [1, 1]} : vector<4x342xf32> to vector<4x288xf32>
    %8 = vector.extract_strided_slice %2 {offsets = [0, 20], sizes = [4, 288], strides = [1, 1]} : vector<4x342xf32> to vector<4x288xf32>
    %9 = vector.extract_strided_slice %2 {offsets = [0, 36], sizes = [4, 288], strides = [1, 1]} : vector<4x342xf32> to vector<4x288xf32>
    %10 = vector.extract_strided_slice %2 {offsets = [0, 37], sizes = [4, 288], strides = [1, 1]} : vector<4x342xf32> to vector<4x288xf32>
    %11 = vector.extract_strided_slice %2 {offsets = [0, 38], sizes = [4, 288], strides = [1, 1]} : vector<4x342xf32> to vector<4x288xf32>
    %12 = tpu.concatenate %3, %4, %5, %6, %7, %8, %9, %10, %11 in 0 : vector<4x288xf32>, vector<4x288xf32>, vector<4x288xf32>, vector<4x288xf32>, vector<4x288xf32>, vector<4x288xf32>, vector<4x288xf32>, vector<4x288xf32>, vector<4x288xf32> -> vector<36x288xf32>
    %13 = arith.truncf %12 : vector<36x288xf32> to vector<36x288xbf16>
    %c0_2 = arith.constant 0 : index
    %c0_3 = arith.constant 0 : index
    %14 = vector.load %arg2[%c0_2, %c0_3] : memref<32x36xbf16, #tpu.memory_space<vmem>>, vector<32x36xbf16>
    %cst = arith.constant dense<0.000000e+00> : vector<32x288xf32>
    %15 = tpu.matmul %14, %13, %cst {dimension_numbers = #tpu.dot_dimension_numbers<[1], [0], [0], [1], [0, 0, 1, 1], [], []>} : vector<32x36xbf16>, vector<36x288xbf16>, vector<32x288xf32> -> vector<32x288xf32>
    %c0_4 = arith.constant 0 : index
    %c0_5 = arith.constant 0 : index
    %16 = vector.load %arg3[%c0_4, %c0_5] : memref<32x1xf32, #tpu.memory_space<vmem>>, vector<32x1xf32>
    %17 = vector.broadcast %16 : vector<32x1xf32> to vector<32x288xf32>
    %18 = arith.addf %15, %17 : vector<32x288xf32>
    %19 = arith.negf %18 : vector<32x288xf32>
    %20 = math.exp %19 : vector<32x288xf32>
    %cst_6 = arith.constant 1.000000e+00 : f32
    %21 = vector.broadcast %cst_6 : f32 to vector<32x288xf32>
    %22 = arith.addf %21, %20 : vector<32x288xf32>
    %23 = arith.divf %21, %22 : vector<32x288xf32>
    %24 = arith.mulf %18, %23 : vector<32x288xf32>
    %c0_7 = arith.constant 0 : index
    %c0_8 = arith.constant 0 : index
    %25 = vector.load %arg4[%c0_7, %c0_8] : memref<16x32xbf16, #tpu.memory_space<vmem>>, vector<16x32xbf16>
    %26 = arith.truncf %24 : vector<32x288xf32> to vector<32x288xbf16>
    %cst_9 = arith.constant dense<0.000000e+00> : vector<16x288xf32>
    %27 = tpu.matmul %25, %26, %cst_9 {dimension_numbers = #tpu.dot_dimension_numbers<[1], [0], [0], [1], [0, 0, 1, 1], [], []>} : vector<16x32xbf16>, vector<32x288xbf16>, vector<16x288xf32> -> vector<16x288xf32>
    %c0_10 = arith.constant 0 : index
    %c0_11 = arith.constant 0 : index
    %28 = vector.load %arg5[%c0_10, %c0_11] : memref<16x1xf32, #tpu.memory_space<vmem>>, vector<16x1xf32>
    %29 = vector.broadcast %28 : vector<16x1xf32> to vector<16x288xf32>
    %30 = arith.addf %27, %29 : vector<16x288xf32>
    %31 = vector.extract_strided_slice %30 {offsets = [0, 0], sizes = [8, 288], strides = [1, 1]} : vector<16x288xf32> to vector<8x288xf32>
    %32 = vector.extract_strided_slice %30 {offsets = [8, 0], sizes = [8, 288], strides = [1, 1]} : vector<16x288xf32> to vector<8x288xf32>
    %cst_12 = arith.constant -3.000000e+01 : f32
    %cst_13 = arith.constant 2.000000e+01 : f32
    %33 = vector.broadcast %cst_12 : f32 to vector<8x288xf32>
    %34 = arith.maximumf %33, %32 : vector<8x288xf32>
    %35 = vector.broadcast %cst_13 : f32 to vector<8x288xf32>
    %36 = arith.minimumf %35, %34 : vector<8x288xf32>
    %cst_14 = arith.constant 5.000000e-01 : f32
    %37 = vector.broadcast %cst_14 : f32 to vector<8x288xf32>
    %38 = arith.mulf %37, %36 : vector<8x288xf32>
    %39 = math.exp %38 : vector<8x288xf32>
    %c0_15 = arith.constant 0 : index
    %c0_16 = arith.constant 0 : index
    %c0_17 = arith.constant 0 : index
    %40 = vector.load %arg6[%c0_15, %c0_16, %c0_17] : memref<4x8x288xbf16, #tpu.memory_space<vmem>>, vector<1x8x288xbf16>
    %41 = vector.shape_cast %40 : vector<1x8x288xbf16> to vector<8x288xbf16>
    %42 = arith.extf %41 : vector<8x288xbf16> to vector<8x288xf32>
    %43 = arith.mulf %42, %39 : vector<8x288xf32>
    %44 = arith.addf %31, %43 : vector<8x288xf32>
    %45 = vector.extract_strided_slice %44 {offsets = [0, 0], sizes = [8, 16], strides = [1, 1]} : vector<8x288xf32> to vector<8x16xf32>
    %46 = vector.extract_strided_slice %44 {offsets = [0, 18], sizes = [8, 16], strides = [1, 1]} : vector<8x288xf32> to vector<8x16xf32>
    %47 = vector.extract_strided_slice %44 {offsets = [0, 36], sizes = [8, 16], strides = [1, 1]} : vector<8x288xf32> to vector<8x16xf32>
    %48 = vector.extract_strided_slice %44 {offsets = [0, 54], sizes = [8, 16], strides = [1, 1]} : vector<8x288xf32> to vector<8x16xf32>
    %49 = vector.extract_strided_slice %44 {offsets = [0, 72], sizes = [8, 16], strides = [1, 1]} : vector<8x288xf32> to vector<8x16xf32>
    %50 = vector.extract_strided_slice %44 {offsets = [0, 90], sizes = [8, 16], strides = [1, 1]} : vector<8x288xf32> to vector<8x16xf32>
    %51 = vector.extract_strided_slice %44 {offsets = [0, 108], sizes = [8, 16], strides = [1, 1]} : vector<8x288xf32> to vector<8x16xf32>
    %52 = vector.extract_strided_slice %44 {offsets = [0, 126], sizes = [8, 16], strides = [1, 1]} : vector<8x288xf32> to vector<8x16xf32>
    %53 = vector.extract_strided_slice %44 {offsets = [0, 144], sizes = [8, 16], strides = [1, 1]} : vector<8x288xf32> to vector<8x16xf32>
    %54 = vector.extract_strided_slice %44 {offsets = [0, 162], sizes = [8, 16], strides = [1, 1]} : vector<8x288xf32> to vector<8x16xf32>
    %55 = vector.extract_strided_slice %44 {offsets = [0, 180], sizes = [8, 16], strides = [1, 1]} : vector<8x288xf32> to vector<8x16xf32>
    %56 = vector.extract_strided_slice %44 {offsets = [0, 198], sizes = [8, 16], strides = [1, 1]} : vector<8x288xf32> to vector<8x16xf32>
    %57 = vector.extract_strided_slice %44 {offsets = [0, 216], sizes = [8, 16], strides = [1, 1]} : vector<8x288xf32> to vector<8x16xf32>
    %58 = vector.extract_strided_slice %44 {offsets = [0, 234], sizes = [8, 16], strides = [1, 1]} : vector<8x288xf32> to vector<8x16xf32>
    %59 = vector.extract_strided_slice %44 {offsets = [0, 252], sizes = [8, 16], strides = [1, 1]} : vector<8x288xf32> to vector<8x16xf32>
    %60 = vector.extract_strided_slice %44 {offsets = [0, 270], sizes = [8, 16], strides = [1, 1]} : vector<8x288xf32> to vector<8x16xf32>
    %61 = tpu.concatenate %45, %46, %47, %48, %49, %50, %51, %52, %53, %54, %55, %56, %57, %58, %59, %60 in 1 : vector<8x16xf32>, vector<8x16xf32>, vector<8x16xf32>, vector<8x16xf32>, vector<8x16xf32>, vector<8x16xf32>, vector<8x16xf32>, vector<8x16xf32>, vector<8x16xf32>, vector<8x16xf32>, vector<8x16xf32>, vector<8x16xf32>, vector<8x16xf32>, vector<8x16xf32>, vector<8x16xf32>, vector<8x16xf32> -> vector<8x256xf32>
    %c0_18 = arith.constant 0 : index
    %c0_19 = arith.constant 0 : index
    %c0_20 = arith.constant 0 : index
    %62 = vector.load %arg7[%c0_18, %c0_19, %c0_20] : memref<4x8x256xf32, #tpu.memory_space<vmem>>, vector<1x8x256xf32>
    %63 = vector.shape_cast %62 : vector<1x8x256xf32> to vector<8x256xf32>
    %64 = vector.shape_cast %61 : vector<8x256xf32> to vector<1x8x256xf32>
    tpu.vector_store %arg7[%c0_18, %c0_19, %c0_20], %64 {strides = array<i32>} : memref<4x8x256xf32, #tpu.memory_space<vmem>>, vector<1x8x256xf32>,
    %c1 = arith.constant 1 : index
    %c0_21 = arith.constant 0 : index
    %c0_22 = arith.constant 0 : index
    %65 = vector.load %arg1[%c1, %c0_21, %c0_22] : memref<4x4x342xbf16, #tpu.memory_space<vmem>>, vector<1x4x342xbf16>
    %66 = vector.shape_cast %65 : vector<1x4x342xbf16> to vector<4x342xbf16>
    %67 = arith.extf %66 : vector<4x342xbf16> to vector<4x342xf32>
    %68 = vector.extract_strided_slice %67 {offsets = [0, 0], sizes = [4, 288], strides = [1, 1]} : vector<4x342xf32> to vector<4x288xf32>
    %69 = vector.extract_strided_slice %67 {offsets = [0, 1], sizes = [4, 288], strides = [1, 1]} : vector<4x342xf32> to vector<4x288xf32>
    %70 = vector.extract_strided_slice %67 {offsets = [0, 2], sizes = [4, 288], strides = [1, 1]} : vector<4x342xf32> to vector<4x288xf32>
    %71 = vector.extract_strided_slice %67 {offsets = [0, 18], sizes = [4, 288], strides = [1, 1]} : vector<4x342xf32> to vector<4x288xf32>
    %72 = vector.extract_strided_slice %67 {offsets = [0, 19], sizes = [4, 288], strides = [1, 1]} : vector<4x342xf32> to vector<4x288xf32>
    %73 = vector.extract_strided_slice %67 {offsets = [0, 20], sizes = [4, 288], strides = [1, 1]} : vector<4x342xf32> to vector<4x288xf32>
    %74 = vector.extract_strided_slice %67 {offsets = [0, 36], sizes = [4, 288], strides = [1, 1]} : vector<4x342xf32> to vector<4x288xf32>
    %75 = vector.extract_strided_slice %67 {offsets = [0, 37], sizes = [4, 288], strides = [1, 1]} : vector<4x342xf32> to vector<4x288xf32>
    %76 = vector.extract_strided_slice %67 {offsets = [0, 38], sizes = [4, 288], strides = [1, 1]} : vector<4x342xf32> to vector<4x288xf32>
    %77 = tpu.concatenate %68, %69, %70, %71, %72, %73, %74, %75, %76 in 0 : vector<4x288xf32>, vector<4x288xf32>, vector<4x288xf32>, vector<4x288xf32>, vector<4x288xf32>, vector<4x288xf32>, vector<4x288xf32>, vector<4x288xf32>, vector<4x288xf32> -> vector<36x288xf32>
    %78 = arith.truncf %77 : vector<36x288xf32> to vector<36x288xbf16>
    %c0_23 = arith.constant 0 : index
    %c0_24 = arith.constant 0 : index
    %79 = vector.load %arg2[%c0_23, %c0_24] : memref<32x36xbf16, #tpu.memory_space<vmem>>, vector<32x36xbf16>
    %cst_25 = arith.constant dense<0.000000e+00> : vector<32x288xf32>
    %80 = tpu.matmul %79, %78, %cst_25 {dimension_numbers = #tpu.dot_dimension_numbers<[1], [0], [0], [1], [0, 0, 1, 1], [], []>} : vector<32x36xbf16>, vector<36x288xbf16>, vector<32x288xf32> -> vector<32x288xf32>
    %c0_26 = arith.constant 0 : index
    %c0_27 = arith.constant 0 : index
    %81 = vector.load %arg3[%c0_26, %c0_27] : memref<32x1xf32, #tpu.memory_space<vmem>>, vector<32x1xf32>
    %82 = vector.broadcast %81 : vector<32x1xf32> to vector<32x288xf32>
    %83 = arith.addf %80, %82 : vector<32x288xf32>
    %84 = arith.negf %83 : vector<32x288xf32>
    %85 = math.exp %84 : vector<32x288xf32>
    %cst_28 = arith.constant 1.000000e+00 : f32
    %86 = vector.broadcast %cst_28 : f32 to vector<32x288xf32>
    %87 = arith.addf %86, %85 : vector<32x288xf32>
    %88 = arith.divf %86, %87 : vector<32x288xf32>
    %89 = arith.mulf %83, %88 : vector<32x288xf32>
    %c0_29 = arith.constant 0 : index
    %c0_30 = arith.constant 0 : index
    %90 = vector.load %arg4[%c0_29, %c0_30] : memref<16x32xbf16, #tpu.memory_space<vmem>>, vector<16x32xbf16>
    %91 = arith.truncf %89 : vector<32x288xf32> to vector<32x288xbf16>
    %cst_31 = arith.constant dense<0.000000e+00> : vector<16x288xf32>
    %92 = tpu.matmul %90, %91, %cst_31 {dimension_numbers = #tpu.dot_dimension_numbers<[1], [0], [0], [1], [0, 0, 1, 1], [], []>} : vector<16x32xbf16>, vector<32x288xbf16>, vector<16x288xf32> -> vector<16x288xf32>
    %c0_32 = arith.constant 0 : index
    %c0_33 = arith.constant 0 : index
    %93 = vector.load %arg5[%c0_32, %c0_33] : memref<16x1xf32, #tpu.memory_space<vmem>>, vector<16x1xf32>
    %94 = vector.broadcast %93 : vector<16x1xf32> to vector<16x288xf32>
    %95 = arith.addf %92, %94 : vector<16x288xf32>
    %96 = vector.extract_strided_slice %95 {offsets = [0, 0], sizes = [8, 288], strides = [1, 1]} : vector<16x288xf32> to vector<8x288xf32>
    %97 = vector.extract_strided_slice %95 {offsets = [8, 0], sizes = [8, 288], strides = [1, 1]} : vector<16x288xf32> to vector<8x288xf32>
    %cst_34 = arith.constant -3.000000e+01 : f32
    %cst_35 = arith.constant 2.000000e+01 : f32
    %98 = vector.broadcast %cst_34 : f32 to vector<8x288xf32>
    %99 = arith.maximumf %98, %97 : vector<8x288xf32>
    %100 = vector.broadcast %cst_35 : f32 to vector<8x288xf32>
    %101 = arith.minimumf %100, %99 : vector<8x288xf32>
    %cst_36 = arith.constant 5.000000e-01 : f32
    %102 = vector.broadcast %cst_36 : f32 to vector<8x288xf32>
    %103 = arith.mulf %102, %101 : vector<8x288xf32>
    %104 = math.exp %103 : vector<8x288xf32>
    %c1_37 = arith.constant 1 : index
    %c0_38 = arith.constant 0 : index
    %c0_39 = arith.constant 0 : index
    %105 = vector.load %arg6[%c1_37, %c0_38, %c0_39] : memref<4x8x288xbf16, #tpu.memory_space<vmem>>, vector<1x8x288xbf16>
    %106 = vector.shape_cast %105 : vector<1x8x288xbf16> to vector<8x288xbf16>
    %107 = arith.extf %106 : vector<8x288xbf16> to vector<8x288xf32>
    %108 = arith.mulf %107, %104 : vector<8x288xf32>
    %109 = arith.addf %96, %108 : vector<8x288xf32>
    %110 = vector.extract_strided_slice %109 {offsets = [0, 0], sizes = [8, 16], strides = [1, 1]} : vector<8x288xf32> to vector<8x16xf32>
    %111 = vector.extract_strided_slice %109 {offsets = [0, 18], sizes = [8, 16], strides = [1, 1]} : vector<8x288xf32> to vector<8x16xf32>
    %112 = vector.extract_strided_slice %109 {offsets = [0, 36], sizes = [8, 16], strides = [1, 1]} : vector<8x288xf32> to vector<8x16xf32>
    %113 = vector.extract_strided_slice %109 {offsets = [0, 54], sizes = [8, 16], strides = [1, 1]} : vector<8x288xf32> to vector<8x16xf32>
    %114 = vector.extract_strided_slice %109 {offsets = [0, 72], sizes = [8, 16], strides = [1, 1]} : vector<8x288xf32> to vector<8x16xf32>
    %115 = vector.extract_strided_slice %109 {offsets = [0, 90], sizes = [8, 16], strides = [1, 1]} : vector<8x288xf32> to vector<8x16xf32>
    %116 = vector.extract_strided_slice %109 {offsets = [0, 108], sizes = [8, 16], strides = [1, 1]} : vector<8x288xf32> to vector<8x16xf32>
    %117 = vector.extract_strided_slice %109 {offsets = [0, 126], sizes = [8, 16], strides = [1, 1]} : vector<8x288xf32> to vector<8x16xf32>
    %118 = vector.extract_strided_slice %109 {offsets = [0, 144], sizes = [8, 16], strides = [1, 1]} : vector<8x288xf32> to vector<8x16xf32>
    %119 = vector.extract_strided_slice %109 {offsets = [0, 162], sizes = [8, 16], strides = [1, 1]} : vector<8x288xf32> to vector<8x16xf32>
    %120 = vector.extract_strided_slice %109 {offsets = [0, 180], sizes = [8, 16], strides = [1, 1]} : vector<8x288xf32> to vector<8x16xf32>
    %121 = vector.extract_strided_slice %109 {offsets = [0, 198], sizes = [8, 16], strides = [1, 1]} : vector<8x288xf32> to vector<8x16xf32>
    %122 = vector.extract_strided_slice %109 {offsets = [0, 216], sizes = [8, 16], strides = [1, 1]} : vector<8x288xf32> to vector<8x16xf32>
    %123 = vector.extract_strided_slice %109 {offsets = [0, 234], sizes = [8, 16], strides = [1, 1]} : vector<8x288xf32> to vector<8x16xf32>
    %124 = vector.extract_strided_slice %109 {offsets = [0, 252], sizes = [8, 16], strides = [1, 1]} : vector<8x288xf32> to vector<8x16xf32>
    %125 = vector.extract_strided_slice %109 {offsets = [0, 270], sizes = [8, 16], strides = [1, 1]} : vector<8x288xf32> to vector<8x16xf32>
    %126 = tpu.concatenate %110, %111, %112, %113, %114, %115, %116, %117, %118, %119, %120, %121, %122, %123, %124, %125 in 1 : vector<8x16xf32>, vector<8x16xf32>, vector<8x16xf32>, vector<8x16xf32>, vector<8x16xf32>, vector<8x16xf32>, vector<8x16xf32>, vector<8x16xf32>, vector<8x16xf32>, vector<8x16xf32>, vector<8x16xf32>, vector<8x16xf32>, vector<8x16xf32>, vector<8x16xf32>, vector<8x16xf32>, vector<8x16xf32> -> vector<8x256xf32>
    %c1_40 = arith.constant 1 : index
    %c0_41 = arith.constant 0 : index
    %c0_42 = arith.constant 0 : index
    %127 = vector.load %arg7[%c1_40, %c0_41, %c0_42] : memref<4x8x256xf32, #tpu.memory_space<vmem>>, vector<1x8x256xf32>
    %128 = vector.shape_cast %127 : vector<1x8x256xf32> to vector<8x256xf32>
    %129 = vector.shape_cast %126 : vector<8x256xf32> to vector<1x8x256xf32>
    tpu.vector_store %arg7[%c1_40, %c0_41, %c0_42], %129 {strides = array<i32>} : memref<4x8x256xf32, #tpu.memory_space<vmem>>, vector<1x8x256xf32>,
    %c2 = arith.constant 2 : index
    %c0_43 = arith.constant 0 : index
    %c0_44 = arith.constant 0 : index
    %130 = vector.load %arg1[%c2, %c0_43, %c0_44] : memref<4x4x342xbf16, #tpu.memory_space<vmem>>, vector<1x4x342xbf16>
    %131 = vector.shape_cast %130 : vector<1x4x342xbf16> to vector<4x342xbf16>
    %132 = arith.extf %131 : vector<4x342xbf16> to vector<4x342xf32>
    %133 = vector.extract_strided_slice %132 {offsets = [0, 0], sizes = [4, 288], strides = [1, 1]} : vector<4x342xf32> to vector<4x288xf32>
    %134 = vector.extract_strided_slice %132 {offsets = [0, 1], sizes = [4, 288], strides = [1, 1]} : vector<4x342xf32> to vector<4x288xf32>
    %135 = vector.extract_strided_slice %132 {offsets = [0, 2], sizes = [4, 288], strides = [1, 1]} : vector<4x342xf32> to vector<4x288xf32>
    %136 = vector.extract_strided_slice %132 {offsets = [0, 18], sizes = [4, 288], strides = [1, 1]} : vector<4x342xf32> to vector<4x288xf32>
    %137 = vector.extract_strided_slice %132 {offsets = [0, 19], sizes = [4, 288], strides = [1, 1]} : vector<4x342xf32> to vector<4x288xf32>
    %138 = vector.extract_strided_slice %132 {offsets = [0, 20], sizes = [4, 288], strides = [1, 1]} : vector<4x342xf32> to vector<4x288xf32>
    %139 = vector.extract_strided_slice %132 {offsets = [0, 36], sizes = [4, 288], strides = [1, 1]} : vector<4x342xf32> to vector<4x288xf32>
    %140 = vector.extract_strided_slice %132 {offsets = [0, 37], sizes = [4, 288], strides = [1, 1]} : vector<4x342xf32> to vector<4x288xf32>
    %141 = vector.extract_strided_slice %132 {offsets = [0, 38], sizes = [4, 288], strides = [1, 1]} : vector<4x342xf32> to vector<4x288xf32>
    %142 = tpu.concatenate %133, %134, %135, %136, %137, %138, %139, %140, %141 in 0 : vector<4x288xf32>, vector<4x288xf32>, vector<4x288xf32>, vector<4x288xf32>, vector<4x288xf32>, vector<4x288xf32>, vector<4x288xf32>, vector<4x288xf32>, vector<4x288xf32> -> vector<36x288xf32>
    %143 = arith.truncf %142 : vector<36x288xf32> to vector<36x288xbf16>
    %c0_45 = arith.constant 0 : index
    %c0_46 = arith.constant 0 : index
    %144 = vector.load %arg2[%c0_45, %c0_46] : memref<32x36xbf16, #tpu.memory_space<vmem>>, vector<32x36xbf16>
    %cst_47 = arith.constant dense<0.000000e+00> : vector<32x288xf32>
    %145 = tpu.matmul %144, %143, %cst_47 {dimension_numbers = #tpu.dot_dimension_numbers<[1], [0], [0], [1], [0, 0, 1, 1], [], []>} : vector<32x36xbf16>, vector<36x288xbf16>, vector<32x288xf32> -> vector<32x288xf32>
    %c0_48 = arith.constant 0 : index
    %c0_49 = arith.constant 0 : index
    %146 = vector.load %arg3[%c0_48, %c0_49] : memref<32x1xf32, #tpu.memory_space<vmem>>, vector<32x1xf32>
    %147 = vector.broadcast %146 : vector<32x1xf32> to vector<32x288xf32>
    %148 = arith.addf %145, %147 : vector<32x288xf32>
    %149 = arith.negf %148 : vector<32x288xf32>
    %150 = math.exp %149 : vector<32x288xf32>
    %cst_50 = arith.constant 1.000000e+00 : f32
    %151 = vector.broadcast %cst_50 : f32 to vector<32x288xf32>
    %152 = arith.addf %151, %150 : vector<32x288xf32>
    %153 = arith.divf %151, %152 : vector<32x288xf32>
    %154 = arith.mulf %148, %153 : vector<32x288xf32>
    %c0_51 = arith.constant 0 : index
    %c0_52 = arith.constant 0 : index
    %155 = vector.load %arg4[%c0_51, %c0_52] : memref<16x32xbf16, #tpu.memory_space<vmem>>, vector<16x32xbf16>
    %156 = arith.truncf %154 : vector<32x288xf32> to vector<32x288xbf16>
    %cst_53 = arith.constant dense<0.000000e+00> : vector<16x288xf32>
    %157 = tpu.matmul %155, %156, %cst_53 {dimension_numbers = #tpu.dot_dimension_numbers<[1], [0], [0], [1], [0, 0, 1, 1], [], []>} : vector<16x32xbf16>, vector<32x288xbf16>, vector<16x288xf32> -> vector<16x288xf32>
    %c0_54 = arith.constant 0 : index
    %c0_55 = arith.constant 0 : index
    %158 = vector.load %arg5[%c0_54, %c0_55] : memref<16x1xf32, #tpu.memory_space<vmem>>, vector<16x1xf32>
    %159 = vector.broadcast %158 : vector<16x1xf32> to vector<16x288xf32>
    %160 = arith.addf %157, %159 : vector<16x288xf32>
    %161 = vector.extract_strided_slice %160 {offsets = [0, 0], sizes = [8, 288], strides = [1, 1]} : vector<16x288xf32> to vector<8x288xf32>
    %162 = vector.extract_strided_slice %160 {offsets = [8, 0], sizes = [8, 288], strides = [1, 1]} : vector<16x288xf32> to vector<8x288xf32>
    %cst_56 = arith.constant -3.000000e+01 : f32
    %cst_57 = arith.constant 2.000000e+01 : f32
    %163 = vector.broadcast %cst_56 : f32 to vector<8x288xf32>
    %164 = arith.maximumf %163, %162 : vector<8x288xf32>
    %165 = vector.broadcast %cst_57 : f32 to vector<8x288xf32>
    %166 = arith.minimumf %165, %164 : vector<8x288xf32>
    %cst_58 = arith.constant 5.000000e-01 : f32
    %167 = vector.broadcast %cst_58 : f32 to vector<8x288xf32>
    %168 = arith.mulf %167, %166 : vector<8x288xf32>
    %169 = math.exp %168 : vector<8x288xf32>
    %c2_59 = arith.constant 2 : index
    %c0_60 = arith.constant 0 : index
    %c0_61 = arith.constant 0 : index
    %170 = vector.load %arg6[%c2_59, %c0_60, %c0_61] : memref<4x8x288xbf16, #tpu.memory_space<vmem>>, vector<1x8x288xbf16>
    %171 = vector.shape_cast %170 : vector<1x8x288xbf16> to vector<8x288xbf16>
    %172 = arith.extf %171 : vector<8x288xbf16> to vector<8x288xf32>
    %173 = arith.mulf %172, %169 : vector<8x288xf32>
    %174 = arith.addf %161, %173 : vector<8x288xf32>
    %175 = vector.extract_strided_slice %174 {offsets = [0, 0], sizes = [8, 16], strides = [1, 1]} : vector<8x288xf32> to vector<8x16xf32>
    %176 = vector.extract_strided_slice %174 {offsets = [0, 18], sizes = [8, 16], strides = [1, 1]} : vector<8x288xf32> to vector<8x16xf32>
    %177 = vector.extract_strided_slice %174 {offsets = [0, 36], sizes = [8, 16], strides = [1, 1]} : vector<8x288xf32> to vector<8x16xf32>
    %178 = vector.extract_strided_slice %174 {offsets = [0, 54], sizes = [8, 16], strides = [1, 1]} : vector<8x288xf32> to vector<8x16xf32>
    %179 = vector.extract_strided_slice %174 {offsets = [0, 72], sizes = [8, 16], strides = [1, 1]} : vector<8x288xf32> to vector<8x16xf32>
    %180 = vector.extract_strided_slice %174 {offsets = [0, 90], sizes = [8, 16], strides = [1, 1]} : vector<8x288xf32> to vector<8x16xf32>
    %181 = vector.extract_strided_slice %174 {offsets = [0, 108], sizes = [8, 16], strides = [1, 1]} : vector<8x288xf32> to vector<8x16xf32>
    %182 = vector.extract_strided_slice %174 {offsets = [0, 126], sizes = [8, 16], strides = [1, 1]} : vector<8x288xf32> to vector<8x16xf32>
    %183 = vector.extract_strided_slice %174 {offsets = [0, 144], sizes = [8, 16], strides = [1, 1]} : vector<8x288xf32> to vector<8x16xf32>
    %184 = vector.extract_strided_slice %174 {offsets = [0, 162], sizes = [8, 16], strides = [1, 1]} : vector<8x288xf32> to vector<8x16xf32>
    %185 = vector.extract_strided_slice %174 {offsets = [0, 180], sizes = [8, 16], strides = [1, 1]} : vector<8x288xf32> to vector<8x16xf32>
    %186 = vector.extract_strided_slice %174 {offsets = [0, 198], sizes = [8, 16], strides = [1, 1]} : vector<8x288xf32> to vector<8x16xf32>
    %187 = vector.extract_strided_slice %174 {offsets = [0, 216], sizes = [8, 16], strides = [1, 1]} : vector<8x288xf32> to vector<8x16xf32>
    %188 = vector.extract_strided_slice %174 {offsets = [0, 234], sizes = [8, 16], strides = [1, 1]} : vector<8x288xf32> to vector<8x16xf32>
    %189 = vector.extract_strided_slice %174 {offsets = [0, 252], sizes = [8, 16], strides = [1, 1]} : vector<8x288xf32> to vector<8x16xf32>
    %190 = vector.extract_strided_slice %174 {offsets = [0, 270], sizes = [8, 16], strides = [1, 1]} : vector<8x288xf32> to vector<8x16xf32>
    %191 = tpu.concatenate %175, %176, %177, %178, %179, %180, %181, %182, %183, %184, %185, %186, %187, %188, %189, %190 in 1 : vector<8x16xf32>, vector<8x16xf32>, vector<8x16xf32>, vector<8x16xf32>, vector<8x16xf32>, vector<8x16xf32>, vector<8x16xf32>, vector<8x16xf32>, vector<8x16xf32>, vector<8x16xf32>, vector<8x16xf32>, vector<8x16xf32>, vector<8x16xf32>, vector<8x16xf32>, vector<8x16xf32>, vector<8x16xf32> -> vector<8x256xf32>
    %c2_62 = arith.constant 2 : index
    %c0_63 = arith.constant 0 : index
    %c0_64 = arith.constant 0 : index
    %192 = vector.load %arg7[%c2_62, %c0_63, %c0_64] : memref<4x8x256xf32, #tpu.memory_space<vmem>>, vector<1x8x256xf32>
    %193 = vector.shape_cast %192 : vector<1x8x256xf32> to vector<8x256xf32>
    %194 = vector.shape_cast %191 : vector<8x256xf32> to vector<1x8x256xf32>
    tpu.vector_store %arg7[%c2_62, %c0_63, %c0_64], %194 {strides = array<i32>} : memref<4x8x256xf32, #tpu.memory_space<vmem>>, vector<1x8x256xf32>,
    %c3 = arith.constant 3 : index
    %c0_65 = arith.constant 0 : index
    %c0_66 = arith.constant 0 : index
    %195 = vector.load %arg1[%c3, %c0_65, %c0_66] : memref<4x4x342xbf16, #tpu.memory_space<vmem>>, vector<1x4x342xbf16>
    %196 = vector.shape_cast %195 : vector<1x4x342xbf16> to vector<4x342xbf16>
    %197 = arith.extf %196 : vector<4x342xbf16> to vector<4x342xf32>
    %198 = vector.extract_strided_slice %197 {offsets = [0, 0], sizes = [4, 288], strides = [1, 1]} : vector<4x342xf32> to vector<4x288xf32>
    %199 = vector.extract_strided_slice %197 {offsets = [0, 1], sizes = [4, 288], strides = [1, 1]} : vector<4x342xf32> to vector<4x288xf32>
    %200 = vector.extract_strided_slice %197 {offsets = [0, 2], sizes = [4, 288], strides = [1, 1]} : vector<4x342xf32> to vector<4x288xf32>
    %201 = vector.extract_strided_slice %197 {offsets = [0, 18], sizes = [4, 288], strides = [1, 1]} : vector<4x342xf32> to vector<4x288xf32>
    %202 = vector.extract_strided_slice %197 {offsets = [0, 19], sizes = [4, 288], strides = [1, 1]} : vector<4x342xf32> to vector<4x288xf32>
    %203 = vector.extract_strided_slice %197 {offsets = [0, 20], sizes = [4, 288], strides = [1, 1]} : vector<4x342xf32> to vector<4x288xf32>
    %204 = vector.extract_strided_slice %197 {offsets = [0, 36], sizes = [4, 288], strides = [1, 1]} : vector<4x342xf32> to vector<4x288xf32>
    %205 = vector.extract_strided_slice %197 {offsets = [0, 37], sizes = [4, 288], strides = [1, 1]} : vector<4x342xf32> to vector<4x288xf32>
    %206 = vector.extract_strided_slice %197 {offsets = [0, 38], sizes = [4, 288], strides = [1, 1]} : vector<4x342xf32> to vector<4x288xf32>
    %207 = tpu.concatenate %198, %199, %200, %201, %202, %203, %204, %205, %206 in 0 : vector<4x288xf32>, vector<4x288xf32>, vector<4x288xf32>, vector<4x288xf32>, vector<4x288xf32>, vector<4x288xf32>, vector<4x288xf32>, vector<4x288xf32>, vector<4x288xf32> -> vector<36x288xf32>
    %208 = arith.truncf %207 : vector<36x288xf32> to vector<36x288xbf16>
    %c0_67 = arith.constant 0 : index
    %c0_68 = arith.constant 0 : index
    %209 = vector.load %arg2[%c0_67, %c0_68] : memref<32x36xbf16, #tpu.memory_space<vmem>>, vector<32x36xbf16>
    %cst_69 = arith.constant dense<0.000000e+00> : vector<32x288xf32>
    %210 = tpu.matmul %209, %208, %cst_69 {dimension_numbers = #tpu.dot_dimension_numbers<[1], [0], [0], [1], [0, 0, 1, 1], [], []>} : vector<32x36xbf16>, vector<36x288xbf16>, vector<32x288xf32> -> vector<32x288xf32>
    %c0_70 = arith.constant 0 : index
    %c0_71 = arith.constant 0 : index
    %211 = vector.load %arg3[%c0_70, %c0_71] : memref<32x1xf32, #tpu.memory_space<vmem>>, vector<32x1xf32>
    %212 = vector.broadcast %211 : vector<32x1xf32> to vector<32x288xf32>
    %213 = arith.addf %210, %212 : vector<32x288xf32>
    %214 = arith.negf %213 : vector<32x288xf32>
    %215 = math.exp %214 : vector<32x288xf32>
    %cst_72 = arith.constant 1.000000e+00 : f32
    %216 = vector.broadcast %cst_72 : f32 to vector<32x288xf32>
    %217 = arith.addf %216, %215 : vector<32x288xf32>
    %218 = arith.divf %216, %217 : vector<32x288xf32>
    %219 = arith.mulf %213, %218 : vector<32x288xf32>
    %c0_73 = arith.constant 0 : index
    %c0_74 = arith.constant 0 : index
    %220 = vector.load %arg4[%c0_73, %c0_74] : memref<16x32xbf16, #tpu.memory_space<vmem>>, vector<16x32xbf16>
    %221 = arith.truncf %219 : vector<32x288xf32> to vector<32x288xbf16>
    %cst_75 = arith.constant dense<0.000000e+00> : vector<16x288xf32>
    %222 = tpu.matmul %220, %221, %cst_75 {dimension_numbers = #tpu.dot_dimension_numbers<[1], [0], [0], [1], [0, 0, 1, 1], [], []>} : vector<16x32xbf16>, vector<32x288xbf16>, vector<16x288xf32> -> vector<16x288xf32>
    %c0_76 = arith.constant 0 : index
    %c0_77 = arith.constant 0 : index
    %223 = vector.load %arg5[%c0_76, %c0_77] : memref<16x1xf32, #tpu.memory_space<vmem>>, vector<16x1xf32>
    %224 = vector.broadcast %223 : vector<16x1xf32> to vector<16x288xf32>
    %225 = arith.addf %222, %224 : vector<16x288xf32>
    %226 = vector.extract_strided_slice %225 {offsets = [0, 0], sizes = [8, 288], strides = [1, 1]} : vector<16x288xf32> to vector<8x288xf32>
    %227 = vector.extract_strided_slice %225 {offsets = [8, 0], sizes = [8, 288], strides = [1, 1]} : vector<16x288xf32> to vector<8x288xf32>
    %cst_78 = arith.constant -3.000000e+01 : f32
    %cst_79 = arith.constant 2.000000e+01 : f32
    %228 = vector.broadcast %cst_78 : f32 to vector<8x288xf32>
    %229 = arith.maximumf %228, %227 : vector<8x288xf32>
    %230 = vector.broadcast %cst_79 : f32 to vector<8x288xf32>
    %231 = arith.minimumf %230, %229 : vector<8x288xf32>
    %cst_80 = arith.constant 5.000000e-01 : f32
    %232 = vector.broadcast %cst_80 : f32 to vector<8x288xf32>
    %233 = arith.mulf %232, %231 : vector<8x288xf32>
    %234 = math.exp %233 : vector<8x288xf32>
    %c3_81 = arith.constant 3 : index
    %c0_82 = arith.constant 0 : index
    %c0_83 = arith.constant 0 : index
    %235 = vector.load %arg6[%c3_81, %c0_82, %c0_83] : memref<4x8x288xbf16, #tpu.memory_space<vmem>>, vector<1x8x288xbf16>
    %236 = vector.shape_cast %235 : vector<1x8x288xbf16> to vector<8x288xbf16>
    %237 = arith.extf %236 : vector<8x288xbf16> to vector<8x288xf32>
    %238 = arith.mulf %237, %234 : vector<8x288xf32>
    %239 = arith.addf %226, %238 : vector<8x288xf32>
    %240 = vector.extract_strided_slice %239 {offsets = [0, 0], sizes = [8, 16], strides = [1, 1]} : vector<8x288xf32> to vector<8x16xf32>
    %241 = vector.extract_strided_slice %239 {offsets = [0, 18], sizes = [8, 16], strides = [1, 1]} : vector<8x288xf32> to vector<8x16xf32>
    %242 = vector.extract_strided_slice %239 {offsets = [0, 36], sizes = [8, 16], strides = [1, 1]} : vector<8x288xf32> to vector<8x16xf32>
    %243 = vector.extract_strided_slice %239 {offsets = [0, 54], sizes = [8, 16], strides = [1, 1]} : vector<8x288xf32> to vector<8x16xf32>
    %244 = vector.extract_strided_slice %239 {offsets = [0, 72], sizes = [8, 16], strides = [1, 1]} : vector<8x288xf32> to vector<8x16xf32>
    %245 = vector.extract_strided_slice %239 {offsets = [0, 90], sizes = [8, 16], strides = [1, 1]} : vector<8x288xf32> to vector<8x16xf32>
    %246 = vector.extract_strided_slice %239 {offsets = [0, 108], sizes = [8, 16], strides = [1, 1]} : vector<8x288xf32> to vector<8x16xf32>
    %247 = vector.extract_strided_slice %239 {offsets = [0, 126], sizes = [8, 16], strides = [1, 1]} : vector<8x288xf32> to vector<8x16xf32>
    %248 = vector.extract_strided_slice %239 {offsets = [0, 144], sizes = [8, 16], strides = [1, 1]} : vector<8x288xf32> to vector<8x16xf32>
    %249 = vector.extract_strided_slice %239 {offsets = [0, 162], sizes = [8, 16], strides = [1, 1]} : vector<8x288xf32> to vector<8x16xf32>
    %250 = vector.extract_strided_slice %239 {offsets = [0, 180], sizes = [8, 16], strides = [1, 1]} : vector<8x288xf32> to vector<8x16xf32>
    %251 = vector.extract_strided_slice %239 {offsets = [0, 198], sizes = [8, 16], strides = [1, 1]} : vector<8x288xf32> to vector<8x16xf32>
    %252 = vector.extract_strided_slice %239 {offsets = [0, 216], sizes = [8, 16], strides = [1, 1]} : vector<8x288xf32> to vector<8x16xf32>
    %253 = vector.extract_strided_slice %239 {offsets = [0, 234], sizes = [8, 16], strides = [1, 1]} : vector<8x288xf32> to vector<8x16xf32>
    %254 = vector.extract_strided_slice %239 {offsets = [0, 252], sizes = [8, 16], strides = [1, 1]} : vector<8x288xf32> to vector<8x16xf32>
    %255 = vector.extract_strided_slice %239 {offsets = [0, 270], sizes = [8, 16], strides = [1, 1]} : vector<8x288xf32> to vector<8x16xf32>
    %256 = tpu.concatenate %240, %241, %242, %243, %244, %245, %246, %247, %248, %249, %250, %251, %252, %253, %254, %255 in 1 : vector<8x16xf32>, vector<8x16xf32>, vector<8x16xf32>, vector<8x16xf32>, vector<8x16xf32>, vector<8x16xf32>, vector<8x16xf32>, vector<8x16xf32>, vector<8x16xf32>, vector<8x16xf32>, vector<8x16xf32>, vector<8x16xf32>, vector<8x16xf32>, vector<8x16xf32>, vector<8x16xf32>, vector<8x16xf32> -> vector<8x256xf32>
    %c3_84 = arith.constant 3 : index
    %c0_85 = arith.constant 0 : index
    %c0_86 = arith.constant 0 : index
    %257 = vector.load %arg7[%c3_84, %c0_85, %c0_86] : memref<4x8x256xf32, #tpu.memory_space<vmem>>, vector<1x8x256xf32>
    %258 = vector.shape_cast %257 : vector<1x8x256xf32> to vector<8x256xf32>
    %259 = vector.shape_cast %256 : vector<8x256xf32> to vector<1x8x256xf32>
    tpu.vector_store %arg7[%c3_84, %c0_85, %c0_86], %259 {strides = array<i32>} : memref<4x8x256xf32, #tpu.memory_space<vmem>>, vector<1x8x256xf32>,
    return
  }
  func.func @transform_0(%arg0: i32) -> (i32, i32, i32) {
    %c0_i32 = arith.constant 0 : i32
    %c0_i32_0 = arith.constant 0 : i32
    %c0_i32_1 = arith.constant 0 : i32
    return %arg0, %c0_i32, %c0_i32_0 : i32, i32, i32
  }
  func.func @transform_1(%arg0: i32) -> (i32, i32) {
    %c0_i32 = arith.constant 0 : i32
    %c0_i32_0 = arith.constant 0 : i32
    %c0_i32_1 = arith.constant 0 : i32
    return %c0_i32, %c0_i32_0 : i32, i32
  }
  func.func @transform_2(%arg0: i32) -> (i32, i32) {
    %c0_i32 = arith.constant 0 : i32
    %c0_i32_0 = arith.constant 0 : i32
    %c0_i32_1 = arith.constant 0 : i32
    return %c0_i32, %c0_i32_0 : i32, i32
  }
  func.func @transform_3(%arg0: i32) -> (i32, i32) {
    %c0_i32 = arith.constant 0 : i32
    %c0_i32_0 = arith.constant 0 : i32
    %c0_i32_1 = arith.constant 0 : i32
    return %c0_i32, %c0_i32_0 : i32, i32
  }
  func.func @transform_4(%arg0: i32) -> (i32, i32) {
    %c0_i32 = arith.constant 0 : i32
    %c0_i32_0 = arith.constant 0 : i32
    %c0_i32_1 = arith.constant 0 : i32
    return %c0_i32, %c0_i32_0 : i32, i32
  }
  func.func @transform_5(%arg0: i32) -> (i32, i32, i32) {
    %c0_i32 = arith.constant 0 : i32
    %c0_i32_0 = arith.constant 0 : i32
    %c0_i32_1 = arith.constant 0 : i32
    return %arg0, %c0_i32, %c0_i32_0 : i32, i32, i32
  }
  func.func @transform_6(%arg0: i32) -> (i32, i32, i32) {
    %c0_i32 = arith.constant 0 : i32
    %c0_i32_0 = arith.constant 0 : i32
    %c0_i32_1 = arith.constant 0 : i32
    return %arg0, %c0_i32, %c0_i32_0 : i32, i32, i32
  }
}

</mosaic_0001>

<llo_original>
// kernel: stage1_forward.1
$region0: #{stage1_forward.1}
  #allocation0 [shape = 'u32[]', space=smem, size = 0x4, offset = 0x4, fixed_abs, tag = 'smem constant byte address 0x4 - core index']
  #allocation1 [shape = 'u32[144,128]{1,0:T(1,128)}', space=vmem, size = 0x12000, scoped, tag = 'internal scratch']
  %s0 = inlined_call_operand.vmem [shape: bf16[8,4,342], index: 0, kind: input, shape index: {}]
  %s1 = inlined_call_operand.vmem [shape: bf16[32,36], index: 1, kind: input, shape index: {}]
  %s2 = inlined_call_operand.vmem [shape: f32[32,1], index: 2, kind: input, shape index: {}]
  %s3 = inlined_call_operand.vmem [shape: bf16[16,32], index: 3, kind: input, shape index: {}]
  %s4 = inlined_call_operand.vmem [shape: f32[16,1], index: 4, kind: input, shape index: {}]
  %s5 = inlined_call_operand.vmem [shape: bf16[8,8,288], index: 5, kind: input, shape index: {}]
  %s6 = inlined_call_operand.vmem [shape: f32[8,8,256], index: 6, kind: output, shape index: {}]
  %s7 = sld [smem:[#allocation0]]
  $region57: #{stage1_forward.1} parent=0
    _
  %s9 = ssub.s32 1, %s7
  %s10 = scalar_select 0, %s9, %s7
  loop: start=0, step=1, limit=4
  $region2: #{stage1_forward.1} parent=0 // loop_pre_header
    _
  $region3: #{stage1_forward.1} parent=0 // loop_header
    %s12 = sphi 0, %s16
    %p13 = scmp.ge.s32.totalorder %s12, 4
    %s22 = sphi 0, %s24
    %s25 = sphi 0, %s22
    %s26 = sphi 0, %s25
    %s42 = sphi 0, %s26
    %s46 = sphi 0, %s46
    %s48 = sphi 0, %s46
    %s49 = sphi 0, %s48
    %s63 = sphi 0, %s49
    %s67 = sphi 0, %s67
    %s69 = sphi 0, %s67
    %s70 = sphi 0, %s69
    %s84 = sphi 0, %s70
    %s88 = sphi 0, %s88
    %s90 = sphi 0, %s88
    %s91 = sphi 0, %s90
    %s105 = sphi 0, %s91
    %s109 = sphi 0, %s109
    %s111 = sphi 0, %s109
    %s112 = sphi 0, %s111
    %s126 = sphi 0, %s112
    %s132 = sphi 0, %s134
    %s135 = sphi 0, %s132
    %s136 = sphi 0, %s135
    %s152 = sphi 0, %s136
    %s158 = sphi 0, %s160
    %s161 = sphi 0, %s158
    %s162 = sphi 0, %s161
    %s178 = sphi 0, %s162
  $region4: #{stage1_forward.1} parent=0 // loop_header_branch
    %15 = sbr.rel (%p13) target = $region8
  $region5: #{stage1_forward.1} parent=0 // loop_body
    %s17 = ssub.s32 %s12, 1
    %s18 = ssub.s32 %s12, 2
    %s19 = sadd.s32 %s12, 1
    %s20 = ssub.s32 %s12, %s19
    %p21 = scmp.eq.s32.totalorder %s20, 0
    %s23 = sadd.s32 %s22, 1
    %s24 = scalar_select %p21, %s22, %s23
    %p27 = pneg %p21
    %p28 = scmp.eq.s32.totalorder %s12, 1
    %p29 = por %p27, %p28
    %p30 = scmp.ne.s32.totalorder %s22, %s25
    %p31 = scmp.eq.s32.totalorder %s12, 0
    %p32 = por %p30, %p31
    %p33 = scmp.ne.s32.totalorder %s22, %s25
    %p34 = scmp.eq.s32.totalorder %s17, 1
    %p35 = por %p33, %p34
    %p36 = scmp.ne.s32.totalorder %s25, %s26
    %p37 = scmp.eq.s32.totalorder %s17, 0
    %p38 = por %p36, %p37
    %p39 = scmp.ne.s32.totalorder %s25, %s26
    %p40 = scmp.eq.s32.totalorder %s18, 1
    %p41 = por %p39, %p40
    %p43 = scmp.ne.s32.totalorder %s26, %s42
    %p44 = scmp.eq.s32.totalorder %s18, 0
    %p45 = por %p43, %p44
    %s47 = sadd.s32 %s46, 1
    %p50 = scmp.eq.s32.totalorder %s12, 1
    %p51 = scmp.ne.s32.totalorder %s46, %s48
    %p52 = scmp.eq.s32.totalorder %s12, 0
    %p53 = por %p51, %p52
    %p54 = scmp.ne.s32.totalorder %s46, %s48
    %p55 = scmp.eq.s32.totalorder %s17, 1
    %p56 = por %p54, %p55
    %p57 = scmp.ne.s32.totalorder %s48, %s49
    %p58 = scmp.eq.s32.totalorder %s17, 0
    %p59 = por %p57, %p58
    %p60 = scmp.ne.s32.totalorder %s48, %s49
    %p61 = scmp.eq.s32.totalorder %s18, 1
    %p62 = por %p60, %p61
    %p64 = scmp.ne.s32.totalorder %s49, %s63
    %p65 = scmp.eq.s32.totalorder %s18, 0
    %p66 = por %p64, %p65
    %s68 = sadd.s32 %s67, 1
    %p71 = scmp.eq.s32.totalorder %s12, 1
    %p72 = scmp.ne.s32.totalorder %s67, %s69
    %p73 = scmp.eq.s32.totalorder %s12, 0
    %p74 = por %p72, %p73
    %p75 = scmp.ne.s32.totalorder %s67, %s69
    %p76 = scmp.eq.s32.totalorder %s17, 1
    %p77 = por %p75, %p76
    %p78 = scmp.ne.s32.totalorder %s69, %s70
    %p79 = scmp.eq.s32.totalorder %s17, 0
    %p80 = por %p78, %p79
    %p81 = scmp.ne.s32.totalorder %s69, %s70
    %p82 = scmp.eq.s32.totalorder %s18, 1
    %p83 = por %p81, %p82
    %p85 = scmp.ne.s32.totalorder %s70, %s84
    %p86 = scmp.eq.s32.totalorder %s18, 0
    %p87 = por %p85, %p86
    %s89 = sadd.s32 %s88, 1
    %p92 = scmp.eq.s32.totalorder %s12, 1
    %p93 = scmp.ne.s32.totalorder %s88, %s90
    %p94 = scmp.eq.s32.totalorder %s12, 0
    %p95 = por %p93, %p94
    %p96 = scmp.ne.s32.totalorder %s88, %s90
    %p97 = scmp.eq.s32.totalorder %s17, 1
    %p98 = por %p96, %p97
    %p99 = scmp.ne.s32.totalorder %s90, %s91
    %p100 = scmp.eq.s32.totalorder %s17, 0
    %p101 = por %p99, %p100
    %p102 = scmp.ne.s32.totalorder %s90, %s91
    %p103 = scmp.eq.s32.totalorder %s18, 1
    %p104 = por %p102, %p103
    %p106 = scmp.ne.s32.totalorder %s91, %s105
    %p107 = scmp.eq.s32.totalorder %s18, 0
    %p108 = por %p106, %p107
    %s110 = sadd.s32 %s109, 1
    %p113 = scmp.eq.s32.totalorder %s12, 1
    %p114 = scmp.ne.s32.totalorder %s109, %s111
    %p115 = scmp.eq.s32.totalorder %s12, 0
    %p116 = por %p114, %p115
    %p117 = scmp.ne.s32.totalorder %s109, %s111
    %p118 = scmp.eq.s32.totalorder %s17, 1
    %p119 = por %p117, %p118
    %p120 = scmp.ne.s32.totalorder %s111, %s112
    %p121 = scmp.eq.s32.totalorder %s17, 0
    %p122 = por %p120, %p121
    %p123 = scmp.ne.s32.totalorder %s111, %s112
    %p124 = scmp.eq.s32.totalorder %s18, 1
    %p125 = por %p123, %p124
    %p127 = scmp.ne.s32.totalorder %s112, %s126
    %p128 = scmp.eq.s32.totalorder %s18, 0
    %p129 = por %p127, %p128
    %s130 = ssub.s32 %s12, %s19
    %p131 = scmp.eq.s32.totalorder %s130, 0
    %s133 = sadd.s32 %s132, 1
    %s134 = scalar_select %p131, %s132, %s133
    %p137 = pneg %p131
    %p138 = scmp.eq.s32.totalorder %s12, 1
    %p139 = por %p137, %p138
    %p140 = scmp.ne.s32.totalorder %s132, %s135
    %p141 = scmp.eq.s32.totalorder %s12, 0
    %p142 = por %p140, %p141
    %p143 = scmp.ne.s32.totalorder %s132, %s135
    %p144 = scmp.eq.s32.totalorder %s17, 1
    %p145 = por %p143, %p144
    %p146 = scmp.ne.s32.totalorder %s135, %s136
    %p147 = scmp.eq.s32.totalorder %s17, 0
    %p148 = por %p146, %p147
    %p149 = scmp.ne.s32.totalorder %s135, %s136
    %p150 = scmp.eq.s32.totalorder %s18, 1
    %p151 = por %p149, %p150
    %p153 = scmp.ne.s32.totalorder %s136, %s152
    %p154 = scmp.eq.s32.totalorder %s18, 0
    %p155 = por %p153, %p154
    %s156 = ssub.s32 %s12, %s19
    %p157 = scmp.eq.s32.totalorder %s156, 0
    %s159 = sadd.s32 %s158, 1
    %s160 = scalar_select %p157, %s158, %s159
    %p163 = pneg %p157
    %p164 = scmp.eq.s32.totalorder %s12, 1
    %p165 = por %p163, %p164
    %p166 = scmp.ne.s32.totalorder %s158, %s161
    %p167 = scmp.eq.s32.totalorder %s12, 0
    %p168 = por %p166, %p167
    %p169 = scmp.ne.s32.totalorder %s158, %s161
    %p170 = scmp.eq.s32.totalorder %s17, 1
    %p171 = por %p169, %p170
    %p172 = scmp.ne.s32.totalorder %s161, %s162
    %p173 = scmp.eq.s32.totalorder %s17, 0
    %p174 = por %p172, %p173
    %p175 = scmp.ne.s32.totalorder %s161, %s162
    %p176 = scmp.eq.s32.totalorder %s18, 1
    %p177 = por %p175, %p176
    %p179 = scmp.ne.s32.totalorder %s162, %s178
    %p180 = scmp.eq.s32.totalorder %s18, 0
    %p181 = por %p179, %p180
    %p182 = scmp.le.s32.totalorder 1, %s12
    %p183 = scmp.lt.s32.totalorder %s12, 3
    %p184 = pnand %p182, %p183
    %p185 = pneg %p184
    // Predicated region
    $region9: #{stage1_forward.1} parent=5 // pred_check
      _
    $region10: #{stage1_forward.1} parent=5 // pred_check_branch
      %187 = sbr.rel (%p184) target = $region12
    $region11: #{stage1_forward.1} parent=5 // pred_region
      %s188 = ssub.s32 %s12, 1
      // Predicated region
      $region13: #{stage1_forward.1} parent=11 // pred_check
        %p189 = pneg %p59
      $region14: #{stage1_forward.1} parent=11 // pred_check_branch
        %191 = sbr.rel (%p189) target = $region16
      $region15: #{stage1_forward.1} parent=11 // pred_region
        _
      $region16: #{stage1_forward.1} parent=11 // pred_fallthru
        _
      // Predicated region
      $region17: #{stage1_forward.1} parent=11 // pred_check
        %p192 = pneg %p80
      $region18: #{stage1_forward.1} parent=11 // pred_check_branch
        %194 = sbr.rel (%p192) target = $region20
      $region19: #{stage1_forward.1} parent=11 // pred_region
        _
      $region20: #{stage1_forward.1} parent=11 // pred_fallthru
        _
      // Predicated region
      $region21: #{stage1_forward.1} parent=11 // pred_check
        %p195 = pneg %p101
      $region22: #{stage1_forward.1} parent=11 // pred_check_branch
        %197 = sbr.rel (%p195) target = $region24
      $region23: #{stage1_forward.1} parent=11 // pred_region
        _
      $region24: #{stage1_forward.1} parent=11 // pred_fallthru
        _
      // Predicated region
      $region25: #{stage1_forward.1} parent=11 // pred_check
        %p198 = pneg %p122
      $region26: #{stage1_forward.1} parent=11 // pred_check_branch
        %200 = sbr.rel (%p198) target = $region28
      $region27: #{stage1_forward.1} parent=11 // pred_region
        _
      $region28: #{stage1_forward.1} parent=11 // pred_fallthru
        _
    $region12: #{stage1_forward.1} parent=5 // pred_fallthru
      _
    %p201 = scmp.lt.s32.totalorder %s12, 2
    // Predicated region
    $region29: #{stage1_forward.1} parent=5 // pred_check
      %p202 = pneg %p201
    $region30: #{stage1_forward.1} parent=5 // pred_check_branch
      %204 = sbr.rel (%p202) target = $region32
    $region31: #{stage1_forward.1} parent=5 // pred_region
      // Predicated region
      $region33: #{stage1_forward.1} parent=31 // pred_check
        %p205 = pneg %p32
      $region34: #{stage1_forward.1} parent=31 // pred_check_branch
        %207 = sbr.rel (%p205) target = $region36
      $region35: #{stage1_forward.1} parent=31 // pred_region
        %s208 = smul.u32 4, %s12
        %p209 = scmp.lt.s32.totalorder %s208, 7
        %s210 = scalar_select %p209, %s208, 7
        %s211 = smul.addr %s210, 3
        %s212 = smul.addr %s211, 2
        %s213 = scalar_lea.vmem %s0, %s212
        %s214 = smul.u32 4, %s12
      $region36: #{stage1_forward.1} parent=31 // pred_fallthru
        _
      // Predicated region
      $region37: #{stage1_forward.1} parent=31 // pred_check
        %p215 = pneg %p142
      $region38: #{stage1_forward.1} parent=31 // pred_check_branch
        %217 = sbr.rel (%p215) target = $region40
      $region39: #{stage1_forward.1} parent=31 // pred_region
        %s218 = smul.u32 4, %s12
        %p219 = scmp.lt.s32.totalorder %s218, 7
        %s220 = scalar_select %p219, %s218, 7
        %s221 = smul.addr %s220, 3
        %s222 = smul.addr %s221, 4
        %s223 = scalar_lea.vmem %s5, %s222
        %s224 = smul.u32 4, %s12
      $region40: #{stage1_forward.1} parent=31 // pred_fallthru
        _
    $region32: #{stage1_forward.1} parent=5 // pred_fallthru
      _
    %p225 = scmp.le.s32.totalorder 1, %s12
    %p226 = scmp.lt.s32.totalorder %s12, 3
    %p227 = pnand %p225, %p226
    %p228 = pneg %p227
    // Predicated region
    $region41: #{stage1_forward.1} parent=5 // pred_check
      _
    $region42: #{stage1_forward.1} parent=5 // pred_check_branch
      %230 = sbr.rel (%p227) target = $region44
    $region43: #{stage1_forward.1} parent=5 // pred_region
      %s231 = ssub.s32 %s12, 1
      %s232 = smul.u32 4, %s17
      %p233 = scmp.lt.s32.totalorder %s232, 7
      %s234 = scalar_select %p233, %s232, 7
      %s235 = smul.addr %s234, 3
      %s236 = smul.addr %s235, 2
      %s237 = scalar_lea.vmem %s0, %s236
      %p238 = pneg %p38
      %p239 = pneg %p35
      %p240 = pneg %p59
      %p241 = pneg %p56
      %p242 = pneg %p80
      %p243 = pneg %p77
      %p244 = pneg %p101
      %p245 = pneg %p98
      %p246 = pneg %p122
      %p247 = pneg %p119
      %s248 = smul.u32 4, %s17
      %p249 = scmp.lt.s32.totalorder %s248, 7
      %s250 = scalar_select %p249, %s248, 7
      %s251 = smul.addr %s250, 3
      %s252 = smul.addr %s251, 4
      %s253 = scalar_lea.vmem %s5, %s252
      %p254 = pneg %p148
      %p255 = pneg %p145
      %p256 = pneg %p174
      %p257 = pneg %p171
      %s258 = smul.u32 4, %s17
      %p259 = scmp.lt.s32.totalorder %s258, 7
      %s260 = scalar_select %p259, %s258, 7
      %s261 = smul.addr %s260, 2
      %s262 = smul.addr %s261, 8
      %s263 = scalar_lea.vmem %s6, %s262
      %s264 = smul.u32 4, %s17
      %p265 = scmp.lt.s32.totalorder %s264, 7
      %s266 = scalar_select %p265, %s264, 7
      %s267 = smul.addr %s266, 3
      %s268 = smul.addr %s267, 2
      %s269 = scalar_lea.vmem %s0, %s268
      %s270 = smul.u32 4, %s17
      %s271 = smul.u32 4, %s17
      %p272 = scmp.lt.s32.totalorder %s271, 7
      %s273 = scalar_select %p272, %s271, 7
      %s274 = smul.addr %s273, 3
      %s275 = smul.addr %s274, 4
      %s276 = scalar_lea.vmem %s5, %s275
      %s277 = smul.u32 4, %s17
      %s278 = smul.u32 4, %s17
      %p279 = scmp.lt.s32.totalorder %s278, 7
      %s280 = scalar_select %p279, %s278, 7
      %s281 = smul.addr %s280, 2
      %s282 = smul.addr %s281, 8
      %s283 = scalar_lea.vmem %s6, %s282
      %s284 = smul.u32 4, %s17
      %v286 = vld [vmem:[%s269] sm:$0x3f]
      %v287 = vunpack.c.l.bf16 %v286
      %v288 = vunpack.c.h.bf16 %v286
      %v291 = vcombine.high %v287, %v287
      %v293 = vcombine.low %v287, %v287
      %v294 = vcombine.low %v288, %v288
      %295 = vrot.lane.b32.xlu0 %v293, 127
      %v296 = vpop.permute.xlu0 %295
      %297 = vrot.lane.b32.xlu0 %v287, 127
      %v298 = vpop.permute.xlu0 %297
      %299 = vrot.lane.b32.xlu0 %v294, 127
      %v300 = vpop.permute.xlu0 %299
      %vm301 = vcmask 1039360
      %v302 = vsel %vm301, %v296, %v298
      %v303 = vsel %vm301, %v298, %v300
      %307 = vrot.lane.b32.xlu0 %v287, 126
      %v308 = vpop.permute.xlu0 %307
      %309 = vrot.lane.b32.xlu0 %v291, 126
      %v310 = vpop.permute.xlu0 %309
      %311 = vrot.lane.b32.xlu0 %v288, 126
      %v312 = vpop.permute.xlu0 %311
      %vm313 = vcmask 1031168
      %v314 = vsel %vm313, %v308, %v310
      %v315 = vsel %vm313, %v310, %v312
      %319 = vrot.lane.b32.xlu0 %v293, 110
      %v320 = vpop.permute.xlu0 %319
      %321 = vrot.lane.b32.xlu0 %v287, 110
      %v322 = vpop.permute.xlu0 %321
      %323 = vrot.lane.b32.xlu0 %v294, 110
      %v324 = vpop.permute.xlu0 %323
      %vm325 = vcmask 900096
      %v326 = vsel %vm325, %v320, %v322
      %v327 = vsel %vm325, %v322, %v324
      %331 = vrot.lane.b32.xlu0 %v287, 109
      %v332 = vpop.permute.xlu0 %331
      %333 = vrot.lane.b32.xlu0 %v291, 109
      %v334 = vpop.permute.xlu0 %333
      %335 = vrot.lane.b32.xlu0 %v288, 109
      %v336 = vpop.permute.xlu0 %335
      %vm337 = vcmask 891904
      %v338 = vsel %vm337, %v332, %v334
      %v339 = vsel %vm337, %v334, %v336
      %343 = vrot.lane.b32.xlu0 %v293, 108
      %v344 = vpop.permute.xlu0 %343
      %345 = vrot.lane.b32.xlu0 %v287, 108
      %v346 = vpop.permute.xlu0 %345
      %347 = vrot.lane.b32.xlu0 %v294, 108
      %v348 = vpop.permute.xlu0 %347
      %vm349 = vcmask 883712
      %v350 = vsel %vm349, %v344, %v346
      %v351 = vsel %vm349, %v346, %v348
      %355 = vrot.lane.b32.xlu0 %v287, 92
      %v356 = vpop.permute.xlu0 %355
      %357 = vrot.lane.b32.xlu0 %v291, 92
      %v358 = vpop.permute.xlu0 %357
      %359 = vrot.lane.b32.xlu0 %v288, 92
      %v360 = vpop.permute.xlu0 %359
      %vm361 = vcmask 752640
      %v362 = vsel %vm361, %v356, %v358
      %v363 = vsel %vm361, %v358, %v360
      %367 = vrot.lane.b32.xlu0 %v293, 91
      %v368 = vpop.permute.xlu0 %367
      %369 = vrot.lane.b32.xlu0 %v287, 91
      %v370 = vpop.permute.xlu0 %369
      %371 = vrot.lane.b32.xlu0 %v294, 91
      %v372 = vpop.permute.xlu0 %371
      %vm373 = vcmask 744448
      %v374 = vsel %vm373, %v368, %v370
      %v375 = vsel %vm373, %v370, %v372
      %379 = vrot.lane.b32.xlu0 %v287, 90
      %v380 = vpop.permute.xlu0 %379
      %381 = vrot.lane.b32.xlu0 %v291, 90
      %v382 = vpop.permute.xlu0 %381
      %383 = vrot.lane.b32.xlu0 %v288, 90
      %v384 = vpop.permute.xlu0 %383
      %vm385 = vcmask 736256
      %v386 = vsel %vm385, %v380, %v382
      %v387 = vsel %vm385, %v382, %v384
      %vm391 = vcmask 1043456
      %v392 = vsel %vm391, %v287, %v302
      %v393 = vsel %vm391, %v291, %v303
      %v394 = vsel %vm391, %v288, %v300
      %v395 = vsel %vm391, %v314, %v326
      %v396 = vsel %vm391, %v315, %v327
      %v397 = vsel %vm391, %v312, %v324
      %v398 = vsel %vm391, %v338, %v350
      %v399 = vsel %vm391, %v339, %v351
      %v400 = vsel %vm391, %v336, %v348
      %v401 = vsel %vm391, %v362, %v374
      %v402 = vsel %vm391, %v363, %v375
      %v403 = vsel %vm391, %v360, %v372
      %v404 = vpack.c.bf16 %v395, %v392
      %v405 = vpack.c.bf16 %v396, %v393
      %v406 = vpack.c.bf16 %v397, %v394
      %v407 = vpack.c.bf16 %v401, %v398
      %v408 = vpack.c.bf16 %v402, %v399
      %v409 = vpack.c.bf16 %v403, %v400
      %v410 = vpack.c.bf16 %v386, %v386
      %v411 = vpack.c.bf16 %v387, %v387
      %v412 = vpack.c.bf16 %v384, %v384
      %v413 = vld [vmem:[%s1] sm:$0xf]
      %v414 = vld [vmem:[%s1 + $0x4] sm:$0xf]
      %v415 = vld [vmem:[%s1 + $0x8] sm:$0xf]
      %v416 = vld [vmem:[%s1 + $0xc] sm:$0xf]
      %v417 = vld [vmem:[%s2] sm:$0xff]
      %v418 = vld [vmem:[%s2 + $0x8] sm:$0xff]
      %v419 = vld [vmem:[%s2 + $0x10] sm:$0xff]
      %v420 = vld [vmem:[%s2 + $0x18] sm:$0xff]
      %422 = vset.pattern.permute.xlu0 0
      %423 = vperm.xlu0 %422, %v417
      %v424 = vpop.permute.xlu0 %423
      %427 = vset.pattern.permute.xlu0 0
      %428 = vperm.xlu0 %427, %v418
      %v429 = vpop.permute.xlu0 %428
      %432 = vset.pattern.permute.xlu0 0
      %433 = vperm.xlu0 %432, %v419
      %v434 = vpop.permute.xlu0 %433
      %437 = vset.pattern.permute.xlu0 0
      %438 = vperm.xlu0 %437, %v420
      %v439 = vpop.permute.xlu0 %438
      %v445 = vunpack.c.l.b16 %v413
      %v446 = vunpack.c.l.b16 %v414
      %v447 = vunpack.c.l.b16 %v415
      %v448 = vunpack.c.l.b16 %v416
      %v449 = vpack.c.b16 %v446, %v445
      %v450 = vpack.c.b16 %v448, %v447
      %vm451 = vcmask 293888
      %v453 = vsel %vm451, %v449, 0
      %v456 = vsel %vm451, %v450, 0
      %vm458 = vcmask 1041408
      %v460 = vsel %vm458, %v410, 0
      %v463 = vsel %vm458, %v411, 0
      %v466 = vsel %vm458, %v412, 0
      %468 = vmatprep.subr.bf16.mxu0 0
      %469 = vmatpush1.bf16.msra.mxu0 0
      %470 = vmatprep.subr.bf16.mxu0 0
      %471 = vmatpush1.bf16.msra.mxu0 0
      %472 = vmatprep.subr.bf16.mxu0 0
      %473 = vmatpush1.bf16.msra.mxu0 0
      %474 = vmatprep.subr.bf16.mxu0 0
      %475 = vmatpush1.bf16.msra.mxu0 0
      %476 = vmatprep.subr.bf16.mxu0 0
      %477 = vmatpush1.bf16.msra.mxu0 0
      %478 = vmatprep.subr.bf16.mxu0 %v463
      %479 = vmatpush1.bf16.msra.mxu0 %v460
      %480 = vmatprep.subr.bf16.mxu0 %v408
      %481 = vmatpush1.bf16.msra.mxu0 %v407
      %482 = vmatprep.subr.bf16.mxu0 %v405
      %483 = vmatpush1.bf16.msra.mxu0 %v404
      %484 = vmatprep.subr.bf16.mxu0 0
      %485 = vmatpush2.bf16.msra.mxu0 0
      %486 = vmatprep.subr.bf16.mxu0 0
      %487 = vmatpush2.bf16.msra.mxu0 0
      %488 = vmatprep.subr.bf16.mxu0 0
      %489 = vmatpush2.bf16.msra.mxu0 0
      %490 = vmatprep.subr.bf16.mxu0 0
      %491 = vmatpush2.bf16.msra.mxu0 0
      %492 = vmatprep.subr.bf16.mxu0 0
      %493 = vmatpush2.bf16.msra.mxu0 0
      %494 = vmatprep.subr.bf16.mxu0 0
      %495 = vmatpush2.bf16.msra.mxu0 0
      %496 = vmatprep.subr.bf16.mxu0 0
      %497 = vmatpush2.bf16.msra.mxu0 0
      %498 = vmatprep.subr.bf16.mxu0 0
      %499 = vmatpush2.bf16.msra.mxu0 0
      %500 = vmatprep.mubr.bf16.mxu0 0
      %501 = vmatmul.mubr.bf16.gmra.mxu0 %v453
      %v502 = vpop.f32.mrf.mxu0
      %v503 = vadd.f32 %v424, %v502
      %v504 = vpop.f32.mrf.mxu0
      %v505 = vadd.f32 %v424, %v504
      %v506 = vpop.f32.mrf.mxu0
      %v507 = vadd.f32 %v429, %v506
      %v508 = vpop.f32.mrf.mxu0
      %v509 = vadd.f32 %v429, %v508
      %510 = vmatprep.mubr.bf16.mxu0 0
      %511 = vmatmul.mubr.bf16.gmra.mxu0 %v456
      %v512 = vpop.f32.mrf.mxu0
      %v513 = vadd.f32 %v434, %v512
      %v514 = vpop.f32.mrf.mxu0
      %v515 = vadd.f32 %v434, %v514
      %v516 = vpop.f32.mrf.mxu0
      %v517 = vadd.f32 %v439, %v516
      %v518 = vpop.f32.mrf.mxu0
      %v519 = vadd.f32 %v439, %v518
      %520 = vdwg.mxu0
      %521 = vmatprep.subr.bf16.mxu0 0
      %522 = vmatpush1.bf16.msra.mxu0 0
      %523 = vmatprep.subr.bf16.mxu0 0
      %524 = vmatpush1.bf16.msra.mxu0 0
      %525 = vmatprep.subr.bf16.mxu0 0
      %526 = vmatpush1.bf16.msra.mxu0 0
      %527 = vmatprep.subr.bf16.mxu0 0
      %528 = vmatpush1.bf16.msra.mxu0 0
      %529 = vmatprep.subr.bf16.mxu0 0
      %530 = vmatpush1.bf16.msra.mxu0 0
      %531 = vmatprep.subr.bf16.mxu0 0
      %532 = vmatpush1.bf16.msra.mxu0 %v466
      %533 = vmatprep.subr.bf16.mxu0 0
      %534 = vmatpush1.bf16.msra.mxu0 %v409
      %535 = vmatprep.subr.bf16.mxu0 0
      %536 = vmatpush1.bf16.msra.mxu0 %v406
      %537 = vmatprep.subr.bf16.mxu0 0
      %538 = vmatpush2.bf16.msra.mxu0 0
      %539 = vmatprep.subr.bf16.mxu0 0
      %540 = vmatpush2.bf16.msra.mxu0 0
      %541 = vmatprep.subr.bf16.mxu0 0
      %542 = vmatpush2.bf16.msra.mxu0 0
      %543 = vmatprep.subr.bf16.mxu0 0
      %544 = vmatpush2.bf16.msra.mxu0 0
      %545 = vmatprep.subr.bf16.mxu0 0
      %546 = vmatpush2.bf16.msra.mxu0 0
      %547 = vmatprep.subr.bf16.mxu0 0
      %548 = vmatpush2.bf16.msra.mxu0 0
      %549 = vmatprep.subr.bf16.mxu0 0
      %550 = vmatpush2.bf16.msra.mxu0 0
      %551 = vmatprep.subr.bf16.mxu0 0
      %552 = vmatpush2.bf16.msra.mxu0 0
      %553 = vmatprep.mubr.bf16.mxu0 0
      %554 = vmatmul.mubr.bf16.gmra.mxu0 %v453
      %v555 = vpop.f32.mrf.mxu0
      %v556 = vadd.f32 %v424, %v555
      %v557 = vpop.f32.mrf.mxu0
      %v558 = vpop.f32.mrf.mxu0
      %v559 = vadd.f32 %v429, %v558
      %v560 = vpop.f32.mrf.mxu0
      %561 = vmatprep.mubr.bf16.mxu0 0
      %562 = vmatmul.mubr.bf16.gmra.mxu0 %v456
      %v563 = vpop.f32.mrf.mxu0
      %v564 = vadd.f32 %v434, %v563
      %v565 = vpop.f32.mrf.mxu0
      %v566 = vpop.f32.mrf.mxu0
      %v567 = vadd.f32 %v439, %v566
      %v568 = vpop.f32.mrf.mxu0
      %569 = vdwg.mxu0
      %v570 = vxor.u32 %v503, 2147483648
      %v571 = vxor.u32 %v505, 2147483648
      %v572 = vxor.u32 %v556, 2147483648
      %v573 = vxor.u32 %v507, 2147483648
      %v574 = vxor.u32 %v509, 2147483648
      %v575 = vxor.u32 %v559, 2147483648
      %v576 = vxor.u32 %v513, 2147483648
      %v577 = vxor.u32 %v515, 2147483648
      %v578 = vxor.u32 %v564, 2147483648
      %v579 = vxor.u32 %v517, 2147483648
      %v580 = vxor.u32 %v519, 2147483648
      %v581 = vxor.u32 %v567, 2147483648
      %v582 = vmul.f32 %v570, 1.442695
      %v583 = vpow.pop %v582
      %v584 = vmul.f32 %v571, 1.442695
      %v585 = vpow.pop %v584
      %v586 = vmul.f32 %v572, 1.442695
      %v587 = vpow.pop %v586
      %v588 = vmul.f32 %v573, 1.442695
      %v589 = vpow.pop %v588
      %v590 = vmul.f32 %v574, 1.442695
      %v591 = vpow.pop %v590
      %v592 = vmul.f32 %v575, 1.442695
      %v593 = vpow.pop %v592
      %v594 = vmul.f32 %v576, 1.442695
      %v595 = vpow.pop %v594
      %v596 = vmul.f32 %v577, 1.442695
      %v597 = vpow.pop %v596
      %v598 = vmul.f32 %v578, 1.442695
      %v599 = vpow.pop %v598
      %v600 = vmul.f32 %v579, 1.442695
      %v601 = vpow.pop %v600
      %v602 = vmul.f32 %v580, 1.442695
      %v603 = vpow.pop %v602
      %v604 = vmul.f32 %v581, 1.442695
      %v605 = vpow.pop %v604
      %v606 = vadd.f32 %v583, 1.0
      %v607 = vadd.f32 %v585, 1.0
      %v608 = vadd.f32 %v587, 1.0
      %v609 = vadd.f32 %v589, 1.0
      %v610 = vadd.f32 %v591, 1.0
      %v611 = vadd.f32 %v593, 1.0
      %v612 = vadd.f32 %v595, 1.0
      %v613 = vadd.f32 %v597, 1.0
      %v614 = vadd.f32 %v599, 1.0
      %v615 = vadd.f32 %v601, 1.0
      %v616 = vadd.f32 %v603, 1.0
      %v617 = vadd.f32 %v605, 1.0
      %v618 = vrcp.pop %v606
      %v619 = vmul.f32 1.0, %v618
      %v620 = vrcp.pop %v607
      %v621 = vmul.f32 1.0, %v620
      %v622 = vrcp.pop %v608
      %v623 = vmul.f32 1.0, %v622
      %v624 = vrcp.pop %v609
      %v625 = vmul.f32 1.0, %v624
      %v626 = vrcp.pop %v610
      %v627 = vmul.f32 1.0, %v626
      %v628 = vrcp.pop %v611
      %v629 = vmul.f32 1.0, %v628
      %v630 = vrcp.pop %v612
      %v631 = vmul.f32 1.0, %v630
      %v632 = vrcp.pop %v613
      %v633 = vmul.f32 1.0, %v632
      %v634 = vrcp.pop %v614
      %v635 = vmul.f32 1.0, %v634
      %v636 = vrcp.pop %v615
      %v637 = vmul.f32 1.0, %v636
      %v638 = vrcp.pop %v616
      %v639 = vmul.f32 1.0, %v638
      %v640 = vrcp.pop %v617
      %v641 = vmul.f32 1.0, %v640
      %v642 = vmul.f32 %v503, %v619
      %v643 = vmul.f32 %v505, %v621
      %v644 = vmul.f32 %v556, %v623
      %v645 = vmul.f32 %v507, %v625
      %v646 = vmul.f32 %v509, %v627
      %v647 = vmul.f32 %v559, %v629
      %v648 = vmul.f32 %v513, %v631
      %v649 = vmul.f32 %v515, %v633
      %v650 = vmul.f32 %v564, %v635
      %v651 = vmul.f32 %v517, %v637
      %v652 = vmul.f32 %v519, %v639
      %v653 = vmul.f32 %v567, %v641
      %v654 = vld [vmem:[%s3] sm:$0xf]
      %v655 = vld [vmem:[%s3 + $0x4] sm:$0xf]
      %v656 = vpack.c.bf16 %v645, %v642
      %v657 = vpack.c.bf16 %v646, %v643
      %v658 = vpack.c.bf16 %v647, %v644
      %v659 = vpack.c.bf16 %v651, %v648
      %v660 = vpack.c.bf16 %v652, %v649
      %v661 = vpack.c.bf16 %v653, %v650
      %v662 = vld [vmem:[%s4] sm:$0xff]
      %v663 = vld [vmem:[%s4 + $0x8] sm:$0xff]
      %665 = vset.pattern.permute.xlu0 0
      %666 = vperm.xlu0 %665, %v662
      %v667 = vpop.permute.xlu0 %666
      %670 = vset.pattern.permute.xlu0 0
      %671 = vperm.xlu0 %670, %v663
      %v672 = vpop.permute.xlu0 %671
      %v676 = vunpack.c.l.b16 %v654
      %v677 = vunpack.c.l.b16 %v655
      %v678 = vpack.c.b16 %v677, %v676
      %vm679 = vcmask 261120
      %v681 = vsel %vm679, %v678, 0
      %683 = vmatprep.subr.bf16.mxu0 0
      %684 = vmatpush1.bf16.msra.mxu0 0
      %685 = vmatprep.subr.bf16.mxu0 0
      %686 = vmatpush1.bf16.msra.mxu0 0
      %687 = vmatprep.subr.bf16.mxu0 0
      %688 = vmatpush1.bf16.msra.mxu0 0
      %689 = vmatprep.subr.bf16.mxu0 0
      %690 = vmatpush1.bf16.msra.mxu0 0
      %691 = vmatprep.subr.bf16.mxu0 0
      %692 = vmatpush1.bf16.msra.mxu0 0
      %693 = vmatprep.subr.bf16.mxu0 0
      %694 = vmatpush1.bf16.msra.mxu0 0
      %695 = vmatprep.subr.bf16.mxu0 %v660
      %696 = vmatpush1.bf16.msra.mxu0 %v659
      %697 = vmatprep.subr.bf16.mxu0 %v657
      %698 = vmatpush1.bf16.msra.mxu0 %v656
      %699 = vmatprep.subr.bf16.mxu0 0
      %700 = vmatpush2.bf16.msra.mxu0 0
      %701 = vmatprep.subr.bf16.mxu0 0
      %702 = vmatpush2.bf16.msra.mxu0 0
      %703 = vmatprep.subr.bf16.mxu0 0
      %704 = vmatpush2.bf16.msra.mxu0 0
      %705 = vmatprep.subr.bf16.mxu0 0
      %706 = vmatpush2.bf16.msra.mxu0 0
      %707 = vmatprep.subr.bf16.mxu0 0
      %708 = vmatpush2.bf16.msra.mxu0 0
      %709 = vmatprep.subr.bf16.mxu0 0
      %710 = vmatpush2.bf16.msra.mxu0 0
      %711 = vmatprep.subr.bf16.mxu0 0
      %712 = vmatpush2.bf16.msra.mxu0 0
      %713 = vmatprep.subr.bf16.mxu0 0
      %714 = vmatpush2.bf16.msra.mxu0 0
      %715 = vmatprep.mubr.bf16.mxu0 0
      %716 = vmatmul.mubr.bf16.gmra.mxu0 %v681
      %v717 = vpop.f32.mrf.mxu0
      %v718 = vadd.f32 %v667, %v717
      %v719 = vpop.f32.mrf.mxu0
      %v720 = vadd.f32 %v667, %v719
      %v721 = vpop.f32.mrf.mxu0
      %v722 = vadd.f32 %v672, %v721
      %v723 = vpop.f32.mrf.mxu0
      %v724 = vadd.f32 %v672, %v723
      %725 = vdwg.mxu0
      %726 = vmatprep.subr.bf16.mxu0 0
      %727 = vmatpush1.bf16.msra.mxu0 0
      %728 = vmatprep.subr.bf16.mxu0 0
      %729 = vmatpush1.bf16.msra.mxu0 0
      %730 = vmatprep.subr.bf16.mxu0 0
      %731 = vmatpush1.bf16.msra.mxu0 0
      %732 = vmatprep.subr.bf16.mxu0 0
      %733 = vmatpush1.bf16.msra.mxu0 0
      %734 = vmatprep.subr.bf16.mxu0 0
      %735 = vmatpush1.bf16.msra.mxu0 0
      %736 = vmatprep.subr.bf16.mxu0 0
      %737 = vmatpush1.bf16.msra.mxu0 0
      %738 = vmatprep.subr.bf16.mxu0 0
      %739 = vmatpush1.bf16.msra.mxu0 %v661
      %740 = vmatprep.subr.bf16.mxu0 0
      %741 = vmatpush1.bf16.msra.mxu0 %v658
      %742 = vmatprep.subr.bf16.mxu0 0
      %743 = vmatpush2.bf16.msra.mxu0 0
      %744 = vmatprep.subr.bf16.mxu0 0
      %745 = vmatpush2.bf16.msra.mxu0 0
      %746 = vmatprep.subr.bf16.mxu0 0
      %747 = vmatpush2.bf16.msra.mxu0 0
      %748 = vmatprep.subr.bf16.mxu0 0
      %749 = vmatpush2.bf16.msra.mxu0 0
      %750 = vmatprep.subr.bf16.mxu0 0
      %751 = vmatpush2.bf16.msra.mxu0 0
      %752 = vmatprep.subr.bf16.mxu0 0
      %753 = vmatpush2.bf16.msra.mxu0 0
      %754 = vmatprep.subr.bf16.mxu0 0
      %755 = vmatpush2.bf16.msra.mxu0 0
      %756 = vmatprep.subr.bf16.mxu0 0
      %757 = vmatpush2.bf16.msra.mxu0 0
      %758 = vmatprep.mubr.bf16.mxu0 0
      %759 = vmatmul.mubr.bf16.gmra.mxu0 %v681
      %v760 = vpop.f32.mrf.mxu0
      %v761 = vadd.f32 %v667, %v760
      %v762 = vpop.f32.mrf.mxu0
      %v763 = vpop.f32.mrf.mxu0
      %v764 = vadd.f32 %v672, %v763
      %v765 = vpop.f32.mrf.mxu0
      %766 = vdwg.mxu0
      %v767 = vmax.f32 %v722, -30.0
      %v768 = vmax.f32 %v724, -30.0
      %v769 = vmax.f32 %v764, -30.0
      %v770 = vmin.f32 %v767, 20.0
      %v771 = vmin.f32 %v768, 20.0
      %v772 = vmin.f32 %v769, 20.0
      %v773 = vmul.f32 %v770, 0.5
      %v774 = vmul.f32 %v771, 0.5
      %v775 = vmul.f32 %v772, 0.5
      %v776 = vmul.f32 %v773, 1.442695
      %v777 = vpow.pop %v776
      %v778 = vmul.f32 %v774, 1.442695
      %v779 = vpow.pop %v778
      %v780 = vmul.f32 %v775, 1.442695
      %v781 = vpow.pop %v780
      %v782 = vld [vmem:[%s276] sm:$0xff]
      %v783 = vld [vmem:[%s276 + $0x8] sm:$0xf]
      %v784 = vunpack.c.l.bf16 %v782
      %v785 = vunpack.c.h.bf16 %v782
      %v786 = vunpack.c.l.bf16 %v783
      %v787 = vmul.f32 %v784, %v777
      %v788 = vmul.f32 %v785, %v779
      %v789 = vmul.f32 %v786, %v781
      %v790 = vadd.f32 %v718, %v787
      %v791 = vadd.f32 %v720, %v788
      %v792 = vadd.f32 %v761, %v789
      %794 = vrot.lane.b32.xlu0 %v790, 126
      %v795 = vpop.permute.xlu0 %794
      %797 = vrot.lane.b32.xlu0 %v790, 124
      %v798 = vpop.permute.xlu0 %797
      %800 = vrot.lane.b32.xlu0 %v790, 122
      %v801 = vpop.permute.xlu0 %800
      %803 = vrot.lane.b32.xlu0 %v790, 120
      %v804 = vpop.permute.xlu0 %803
      %806 = vrot.lane.b32.xlu0 %v790, 118
      %v807 = vpop.permute.xlu0 %806
      %809 = vrot.lane.b32.xlu0 %v790, 116
      %v810 = vpop.permute.xlu0 %809
      %813 = vrot.lane.b32.xlu0 %v790, 114
      %v814 = vpop.permute.xlu0 %813
      %815 = vrot.lane.b32.xlu0 %v791, 114
      %v816 = vpop.permute.xlu0 %815
      %vm817 = vcmask 932864
      %v818 = vsel %vm817, %v814, %v816
      %820 = vrot.lane.b32.xlu0 %v791, 112
      %v821 = vpop.permute.xlu0 %820
      %823 = vrot.lane.b32.xlu0 %v791, 110
      %v824 = vpop.permute.xlu0 %823
      %826 = vrot.lane.b32.xlu0 %v791, 108
      %v827 = vpop.permute.xlu0 %826
      %829 = vrot.lane.b32.xlu0 %v791, 106
      %v830 = vpop.permute.xlu0 %829
      %832 = vrot.lane.b32.xlu0 %v791, 104
      %v833 = vpop.permute.xlu0 %832
      %835 = vrot.lane.b32.xlu0 %v791, 102
      %v836 = vpop.permute.xlu0 %835
      %839 = vrot.lane.b32.xlu0 %v791, 100
      %v840 = vpop.permute.xlu0 %839
      %841 = vrot.lane.b32.xlu0 %v792, 100
      %v842 = vpop.permute.xlu0 %841
      %vm843 = vcmask 818176
      %v844 = vsel %vm843, %v840, %v842
      %846 = vrot.lane.b32.xlu0 %v792, 98
      %v847 = vpop.permute.xlu0 %846
      %vm849 = vcmask 130048
      %v850 = vsel %vm849, %v790, %v795
      %v851 = vsel %vm679, %v850, %v798
      %vm852 = vcmask 392192
      %v853 = vsel %vm852, %v851, %v801
      %vm854 = vcmask 523264
      %v855 = vsel %vm854, %v853, %v804
      %vm856 = vcmask 654336
      %v857 = vsel %vm856, %v855, %v807
      %vm858 = vcmask 785408
      %v859 = vsel %vm858, %v857, %v810
      %vm860 = vcmask 916480
      %v861 = vsel %vm860, %v859, %v818
      %v862 = vsel %vm849, %v821, %v824
      %v863 = vsel %vm679, %v862, %v827
      %v864 = vsel %vm852, %v863, %v830
      %v865 = vsel %vm854, %v864, %v833
      %v866 = vsel %vm856, %v865, %v836
      %v867 = vsel %vm858, %v866, %v844
      %v868 = vsel %vm860, %v867, %v847
      %869 = vst [vmem:[%s283] sm:$0xff] %v861
      %870 = vst [vmem:[%s283 + $0x8] sm:$0xff] %v868
      %s871 = scalar_lea.vmem %s269, 6
      %v872 = vld [vmem:[%s871] sm:$0x3f]
      %v873 = vunpack.c.l.bf16 %v872
      %v874 = vunpack.c.h.bf16 %v872
      %v877 = vcombine.high %v873, %v873
      %v879 = vcombine.low %v873, %v873
      %v880 = vcombine.low %v874, %v874
      %881 = vrot.lane.b32.xlu0 %v879, 127
      %v882 = vpop.permute.xlu0 %881
      %883 = vrot.lane.b32.xlu0 %v873, 127
      %v884 = vpop.permute.xlu0 %883
      %885 = vrot.lane.b32.xlu0 %v880, 127
      %v886 = vpop.permute.xlu0 %885
      %v887 = vsel %vm301, %v882, %v884
      %v888 = vsel %vm301, %v884, %v886
      %892 = vrot.lane.b32.xlu0 %v873, 126
      %v893 = vpop.permute.xlu0 %892
      %894 = vrot.lane.b32.xlu0 %v877, 126
      %v895 = vpop.permute.xlu0 %894
      %896 = vrot.lane.b32.xlu0 %v874, 126
      %v897 = vpop.permute.xlu0 %896
      %v898 = vsel %vm313, %v893, %v895
      %v899 = vsel %vm313, %v895, %v897
      %903 = vrot.lane.b32.xlu0 %v879, 110
      %v904 = vpop.permute.xlu0 %903
      %905 = vrot.lane.b32.xlu0 %v873, 110
      %v906 = vpop.permute.xlu0 %905
      %907 = vrot.lane.b32.xlu0 %v880, 110
      %v908 = vpop.permute.xlu0 %907
      %v909 = vsel %vm325, %v904, %v906
      %v910 = vsel %vm325, %v906, %v908
      %914 = vrot.lane.b32.xlu0 %v873, 109
      %v915 = vpop.permute.xlu0 %914
      %916 = vrot.lane.b32.xlu0 %v877, 109
      %v917 = vpop.permute.xlu0 %916
      %918 = vrot.lane.b32.xlu0 %v874, 109
      %v919 = vpop.permute.xlu0 %918
      %v920 = vsel %vm337, %v915, %v917
      %v921 = vsel %vm337, %v917, %v919
      %925 = vrot.lane.b32.xlu0 %v879, 108
      %v926 = vpop.permute.xlu0 %925
      %927 = vrot.lane.b32.xlu0 %v873, 108
      %v928 = vpop.permute.xlu0 %927
      %929 = vrot.lane.b32.xlu0 %v880, 108
      %v930 = vpop.permute.xlu0 %929
      %v931 = vsel %vm349, %v926, %v928
      %v932 = vsel %vm349, %v928, %v930
      %936 = vrot.lane.b32.xlu0 %v873, 92
      %v937 = vpop.permute.xlu0 %936
      %938 = vrot.lane.b32.xlu0 %v877, 92
      %v939 = vpop.permute.xlu0 %938
      %940 = vrot.lane.b32.xlu0 %v874, 92
      %v941 = vpop.permute.xlu0 %940
      %v942 = vsel %vm361, %v937, %v939
      %v943 = vsel %vm361, %v939, %v941
      %947 = vrot.lane.b32.xlu0 %v879, 91
      %v948 = vpop.permute.xlu0 %947
      %949 = vrot.lane.b32.xlu0 %v873, 91
      %v950 = vpop.permute.xlu0 %949
      %951 = vrot.lane.b32.xlu0 %v880, 91
      %v952 = vpop.permute.xlu0 %951
      %v953 = vsel %vm373, %v948, %v950
      %v954 = vsel %vm373, %v950, %v952
      %958 = vrot.lane.b32.xlu0 %v873, 90
      %v959 = vpop.permute.xlu0 %958
      %960 = vrot.lane.b32.xlu0 %v877, 90
      %v961 = vpop.permute.xlu0 %960
      %962 = vrot.lane.b32.xlu0 %v874, 90
      %v963 = vpop.permute.xlu0 %962
      %v964 = vsel %vm385, %v959, %v961
      %v965 = vsel %vm385, %v961, %v963
      %v969 = vsel %vm391, %v873, %v887
      %v970 = vsel %vm391, %v877, %v888
      %v971 = vsel %vm391, %v874, %v886
      %v972 = vsel %vm391, %v898, %v909
      %v973 = vsel %vm391, %v899, %v910
      %v974 = vsel %vm391, %v897, %v908
      %v975 = vsel %vm391, %v920, %v931
      %v976 = vsel %vm391, %v921, %v932
      %v977 = vsel %vm391, %v919, %v930
      %v978 = vsel %vm391, %v942, %v953
      %v979 = vsel %vm391, %v943, %v954
      %v980 = vsel %vm391, %v941, %v952
      %v981 = vpack.c.bf16 %v972, %v969
      %v982 = vpack.c.bf16 %v973, %v970
      %v983 = vpack.c.bf16 %v974, %v971
      %v984 = vpack.c.bf16 %v978, %v975
      %v985 = vpack.c.bf16 %v979, %v976
      %v986 = vpack.c.bf16 %v980, %v977
      %v987 = vpack.c.bf16 %v964, %v964
      %v988 = vpack.c.bf16 %v965, %v965
      %v989 = vpack.c.bf16 %v963, %v963
      %v990 = vld [vmem:[%s1] sm:$0xf]
      %v991 = vld [vmem:[%s1 + $0x4] sm:$0xf]
      %v992 = vld [vmem:[%s1 + $0x8] sm:$0xf]
      %v993 = vld [vmem:[%s1 + $0xc] sm:$0xf]
      %v994 = vld [vmem:[%s2] sm:$0xff]
      %v995 = vld [vmem:[%s2 + $0x8] sm:$0xff]
      %v996 = vld [vmem:[%s2 + $0x10] sm:$0xff]
      %v997 = vld [vmem:[%s2 + $0x18] sm:$0xff]
      %999 = vset.pattern.permute.xlu0 0
      %1000 = vperm.xlu0 %999, %v994
      %v1001 = vpop.permute.xlu0 %1000
      %1004 = vset.pattern.permute.xlu0 0
      %1005 = vperm.xlu0 %1004, %v995
      %v1006 = vpop.permute.xlu0 %1005
      %1009 = vset.pattern.permute.xlu0 0
      %1010 = vperm.xlu0 %1009, %v996
      %v1011 = vpop.permute.xlu0 %1010
      %1014 = vset.pattern.permute.xlu0 0
      %1015 = vperm.xlu0 %1014, %v997
      %v1016 = vpop.permute.xlu0 %1015
      %v1022 = vunpack.c.l.b16 %v990
      %v1023 = vunpack.c.l.b16 %v991
      %v1024 = vunpack.c.l.b16 %v992
      %v1025 = vunpack.c.l.b16 %v993
      %v1026 = vpack.c.b16 %v1023, %v1022
      %v1027 = vpack.c.b16 %v1025, %v1024
      %v1029 = vsel %vm451, %v1026, 0
      %v1032 = vsel %vm451, %v1027, 0
      %v1035 = vsel %vm458, %v987, 0
      %v1038 = vsel %vm458, %v988, 0
      %v1041 = vsel %vm458, %v989, 0
      %1043 = vmatprep.subr.bf16.mxu0 0
      %1044 = vmatpush1.bf16.msra.mxu0 0
      %1045 = vmatprep.subr.bf16.mxu0 0
      %1046 = vmatpush1.bf16.msra.mxu0 0
      %1047 = vmatprep.subr.bf16.mxu0 0
      %1048 = vmatpush1.bf16.msra.mxu0 0
      %1049 = vmatprep.subr.bf16.mxu0 0
      %1050 = vmatpush1.bf16.msra.mxu0 0
      %1051 = vmatprep.subr.bf16.mxu0 0
      %1052 = vmatpush1.bf16.msra.mxu0 0
      %1053 = vmatprep.subr.bf16.mxu0 %v1038
      %1054 = vmatpush1.bf16.msra.mxu0 %v1035
      %1055 = vmatprep.subr.bf16.mxu0 %v985
      %1056 = vmatpush1.bf16.msra.mxu0 %v984
      %1057 = vmatprep.subr.bf16.mxu0 %v982
      %1058 = vmatpush1.bf16.msra.mxu0 %v981
      %1059 = vmatprep.subr.bf16.mxu0 0
      %1060 = vmatpush2.bf16.msra.mxu0 0
      %1061 = vmatprep.subr.bf16.mxu0 0
      %1062 = vmatpush2.bf16.msra.mxu0 0
      %1063 = vmatprep.subr.bf16.mxu0 0
      %1064 = vmatpush2.bf16.msra.mxu0 0
      %1065 = vmatprep.subr.bf16.mxu0 0
      %1066 = vmatpush2.bf16.msra.mxu0 0
      %1067 = vmatprep.subr.bf16.mxu0 0
      %1068 = vmatpush2.bf16.msra.mxu0 0
      %1069 = vmatprep.subr.bf16.mxu0 0
      %1070 = vmatpush2.bf16.msra.mxu0 0
      %1071 = vmatprep.subr.bf16.mxu0 0
      %1072 = vmatpush2.bf16.msra.mxu0 0
      %1073 = vmatprep.subr.bf16.mxu0 0
      %1074 = vmatpush2.bf16.msra.mxu0 0
      %1075 = vmatprep.mubr.bf16.mxu0 0
      %1076 = vmatmul.mubr.bf16.gmra.mxu0 %v1029
      %v1077 = vpop.f32.mrf.mxu0
      %v1078 = vadd.f32 %v1001, %v1077
      %v1079 = vpop.f32.mrf.mxu0
      %v1080 = vadd.f32 %v1001, %v1079
      %v1081 = vpop.f32.mrf.mxu0
      %v1082 = vadd.f32 %v1006, %v1081
      %v1083 = vpop.f32.mrf.mxu0
      %v1084 = vadd.f32 %v1006, %v1083
      %1085 = vmatprep.mubr.bf16.mxu0 0
      %1086 = vmatmul.mubr.bf16.gmra.mxu0 %v1032
      %v1087 = vpop.f32.mrf.mxu0
      %v1088 = vadd.f32 %v1011, %v1087
      %v1089 = vpop.f32.mrf.mxu0
      %v1090 = vadd.f32 %v1011, %v1089
      %v1091 = vpop.f32.mrf.mxu0
      %v1092 = vadd.f32 %v1016, %v1091
      %v1093 = vpop.f32.mrf.mxu0
      %v1094 = vadd.f32 %v1016, %v1093
      %1095 = vdwg.mxu0
      %1096 = vmatprep.subr.bf16.mxu0 0
      %1097 = vmatpush1.bf16.msra.mxu0 0
      %1098 = vmatprep.subr.bf16.mxu0 0
      %1099 = vmatpush1.bf16.msra.mxu0 0
      %1100 = vmatprep.subr.bf16.mxu0 0
      %1101 = vmatpush1.bf16.msra.mxu0 0
      %1102 = vmatprep.subr.bf16.mxu0 0
      %1103 = vmatpush1.bf16.msra.mxu0 0
      %1104 = vmatprep.subr.bf16.mxu0 0
      %1105 = vmatpush1.bf16.msra.mxu0 0
      %1106 = vmatprep.subr.bf16.mxu0 0
      %1107 = vmatpush1.bf16.msra.mxu0 %v1041
      %1108 = vmatprep.subr.bf16.mxu0 0
      %1109 = vmatpush1.bf16.msra.mxu0 %v986
      %1110 = vmatprep.subr.bf16.mxu0 0
      %1111 = vmatpush1.bf16.msra.mxu0 %v983
      %1112 = vmatprep.subr.bf16.mxu0 0
      %1113 = vmatpush2.bf16.msra.mxu0 0
      %1114 = vmatprep.subr.bf16.mxu0 0
      %1115 = vmatpush2.bf16.msra.mxu0 0
      %1116 = vmatprep.subr.bf16.mxu0 0
      %1117 = vmatpush2.bf16.msra.mxu0 0
      %1118 = vmatprep.subr.bf16.mxu0 0
      %1119 = vmatpush2.bf16.msra.mxu0 0
      %1120 = vmatprep.subr.bf16.mxu0 0
      %1121 = vmatpush2.bf16.msra.mxu0 0
      %1122 = vmatprep.subr.bf16.mxu0 0
      %1123 = vmatpush2.bf16.msra.mxu0 0
      %1124 = vmatprep.subr.bf16.mxu0 0
      %1125 = vmatpush2.bf16.msra.mxu0 0
      %1126 = vmatprep.subr.bf16.mxu0 0
      %1127 = vmatpush2.bf16.msra.mxu0 0
      %1128 = vmatprep.mubr.bf16.mxu0 0
      %1129 = vmatmul.mubr.bf16.gmra.mxu0 %v1029
      %v1130 = vpop.f32.mrf.mxu0
      %v1131 = vadd.f32 %v1001, %v1130
      %v1132 = vpop.f32.mrf.mxu0
      %v1133 = vpop.f32.mrf.mxu0
      %v1134 = vadd.f32 %v1006, %v1133
      %v1135 = vpop.f32.mrf.mxu0
      %1136 = vmatprep.mubr.bf16.mxu0 0
      %1137 = vmatmul.mubr.bf16.gmra.mxu0 %v1032
      %v1138 = vpop.f32.mrf.mxu0
      %v1139 = vadd.f32 %v1011, %v1138
      %v1140 = vpop.f32.mrf.mxu0
      %v1141 = vpop.f32.mrf.mxu0
      %v1142 = vadd.f32 %v1016, %v1141
      %v1143 = vpop.f32.mrf.mxu0
      %1144 = vdwg.mxu0
      %v1145 = vxor.u32 %v1078, 2147483648
      %v1146 = vxor.u32 %v1080, 2147483648
      %v1147 = vxor.u32 %v1131, 2147483648
      %v1148 = vxor.u32 %v1082, 2147483648
      %v1149 = vxor.u32 %v1084, 2147483648
      %v1150 = vxor.u32 %v1134, 2147483648
      %v1151 = vxor.u32 %v1088, 2147483648
      %v1152 = vxor.u32 %v1090, 2147483648
      %v1153 = vxor.u32 %v1139, 2147483648
      %v1154 = vxor.u32 %v1092, 2147483648
      %v1155 = vxor.u32 %v1094, 2147483648
      %v1156 = vxor.u32 %v1142, 2147483648
      %v1157 = vmul.f32 %v1145, 1.442695
      %v1158 = vpow.pop %v1157
      %v1159 = vmul.f32 %v1146, 1.442695
      %v1160 = vpow.pop %v1159
      %v1161 = vmul.f32 %v1147, 1.442695
      %v1162 = vpow.pop %v1161
      %v1163 = vmul.f32 %v1148, 1.442695
      %v1164 = vpow.pop %v1163
      %v1165 = vmul.f32 %v1149, 1.442695
      %v1166 = vpow.pop %v1165
      %v1167 = vmul.f32 %v1150, 1.442695
      %v1168 = vpow.pop %v1167
      %v1169 = vmul.f32 %v1151, 1.442695
      %v1170 = vpow.pop %v1169
      %v1171 = vmul.f32 %v1152, 1.442695
      %v1172 = vpow.pop %v1171
      %v1173 = vmul.f32 %v1153, 1.442695
      %v1174 = vpow.pop %v1173
      %v1175 = vmul.f32 %v1154, 1.442695
      %v1176 = vpow.pop %v1175
      %v1177 = vmul.f32 %v1155, 1.442695
      %v1178 = vpow.pop %v1177
      %v1179 = vmul.f32 %v1156, 1.442695
      %v1180 = vpow.pop %v1179
      %v1181 = vadd.f32 %v1158, 1.0
      %v1182 = vadd.f32 %v1160, 1.0
      %v1183 = vadd.f32 %v1162, 1.0
      %v1184 = vadd.f32 %v1164, 1.0
      %v1185 = vadd.f32 %v1166, 1.0
      %v1186 = vadd.f32 %v1168, 1.0
      %v1187 = vadd.f32 %v1170, 1.0
      %v1188 = vadd.f32 %v1172, 1.0
      %v1189 = vadd.f32 %v1174, 1.0
      %v1190 = vadd.f32 %v1176, 1.0
      %v1191 = vadd.f32 %v1178, 1.0
      %v1192 = vadd.f32 %v1180, 1.0
      %v1193 = vrcp.pop %v1181
      %v1194 = vmul.f32 1.0, %v1193
      %v1195 = vrcp.pop %v1182
      %v1196 = vmul.f32 1.0, %v1195
      %v1197 = vrcp.pop %v1183
      %v1198 = vmul.f32 1.0, %v1197
      %v1199 = vrcp.pop %v1184
      %v1200 = vmul.f32 1.0, %v1199
      %v1201 = vrcp.pop %v1185
      %v1202 = vmul.f32 1.0, %v1201
      %v1203 = vrcp.pop %v1186
      %v1204 = vmul.f32 1.0, %v1203
      %v1205 = vrcp.pop %v1187
      %v1206 = vmul.f32 1.0, %v1205
      %v1207 = vrcp.pop %v1188
      %v1208 = vmul.f32 1.0, %v1207
      %v1209 = vrcp.pop %v1189
      %v1210 = vmul.f32 1.0, %v1209
      %v1211 = vrcp.pop %v1190
      %v1212 = vmul.f32 1.0, %v1211
      %v1213 = vrcp.pop %v1191
      %v1214 = vmul.f32 1.0, %v1213
      %v1215 = vrcp.pop %v1192
      %v1216 = vmul.f32 1.0, %v1215
      %v1217 = vmul.f32 %v1078, %v1194
      %v1218 = vmul.f32 %v1080, %v1196
      %v1219 = vmul.f32 %v1131, %v1198
      %v1220 = vmul.f32 %v1082, %v1200
      %v1221 = vmul.f32 %v1084, %v1202
      %v1222 = vmul.f32 %v1134, %v1204
      %v1223 = vmul.f32 %v1088, %v1206
      %v1224 = vmul.f32 %v1090, %v1208
      %v1225 = vmul.f32 %v1139, %v1210
      %v1226 = vmul.f32 %v1092, %v1212
      %v1227 = vmul.f32 %v1094, %v1214
      %v1228 = vmul.f32 %v1142, %v1216
      %v1229 = vld [vmem:[%s3] sm:$0xf]
      %v1230 = vld [vmem:[%s3 + $0x4] sm:$0xf]
      %v1231 = vpack.c.bf16 %v1220, %v1217
      %v1232 = vpack.c.bf16 %v1221, %v1218
      %v1233 = vpack.c.bf16 %v1222, %v1219
      %v1234 = vpack.c.bf16 %v1226, %v1223
      %v1235 = vpack.c.bf16 %v1227, %v1224
      %v1236 = vpack.c.bf16 %v1228, %v1225
      %v1237 = vld [vmem:[%s4] sm:$0xff]
      %v1238 = vld [vmem:[%s4 + $0x8] sm:$0xff]
      %1240 = vset.pattern.permute.xlu0 0
      %1241 = vperm.xlu0 %1240, %v1237
      %v1242 = vpop.permute.xlu0 %1241
      %1245 = vset.pattern.permute.xlu0 0
      %1246 = vperm.xlu0 %1245, %v1238
      %v1247 = vpop.permute.xlu0 %1246
      %v1251 = vunpack.c.l.b16 %v1229
      %v1252 = vunpack.c.l.b16 %v1230
      %v1253 = vpack.c.b16 %v1252, %v1251
      %v1255 = vsel %vm679, %v1253, 0
      %1257 = vmatprep.subr.bf16.mxu0 0
      %1258 = vmatpush1.bf16.msra.mxu0 0
      %1259 = vmatprep.subr.bf16.mxu0 0
      %1260 = vmatpush1.bf16.msra.mxu0 0
      %1261 = vmatprep.subr.bf16.mxu0 0
      %1262 = vmatpush1.bf16.msra.mxu0 0
      %1263 = vmatprep.subr.bf16.mxu0 0
      %1264 = vmatpush1.bf16.msra.mxu0 0
      %1265 = vmatprep.subr.bf16.mxu0 0
      %1266 = vmatpush1.bf16.msra.mxu0 0
      %1267 = vmatprep.subr.bf16.mxu0 0
      %1268 = vmatpush1.bf16.msra.mxu0 0
      %1269 = vmatprep.subr.bf16.mxu0 %v1235
      %1270 = vmatpush1.bf16.msra.mxu0 %v1234
      %1271 = vmatprep.subr.bf16.mxu0 %v1232
      %1272 = vmatpush1.bf16.msra.mxu0 %v1231
      %1273 = vmatprep.subr.bf16.mxu0 0
      %1274 = vmatpush2.bf16.msra.mxu0 0
      %1275 = vmatprep.subr.bf16.mxu0 0
      %1276 = vmatpush2.bf16.msra.mxu0 0
      %1277 = vmatprep.subr.bf16.mxu0 0
      %1278 = vmatpush2.bf16.msra.mxu0 0
      %1279 = vmatprep.subr.bf16.mxu0 0
      %1280 = vmatpush2.bf16.msra.mxu0 0
      %1281 = vmatprep.subr.bf16.mxu0 0
      %1282 = vmatpush2.bf16.msra.mxu0 0
      %1283 = vmatprep.subr.bf16.mxu0 0
      %1284 = vmatpush2.bf16.msra.mxu0 0
      %1285 = vmatprep.subr.bf16.mxu0 0
      %1286 = vmatpush2.bf16.msra.mxu0 0
      %1287 = vmatprep.subr.bf16.mxu0 0
      %1288 = vmatpush2.bf16.msra.mxu0 0
      %1289 = vmatprep.mubr.bf16.mxu0 0
      %1290 = vmatmul.mubr.bf16.gmra.mxu0 %v1255
      %v1291 = vpop.f32.mrf.mxu0
      %v1292 = vadd.f32 %v1242, %v1291
      %v1293 = vpop.f32.mrf.mxu0
      %v1294 = vadd.f32 %v1242, %v1293
      %v1295 = vpop.f32.mrf.mxu0
      %v1296 = vadd.f32 %v1247, %v1295
      %v1297 = vpop.f32.mrf.mxu0
      %v1298 = vadd.f32 %v1247, %v1297
      %1299 = vdwg.mxu0
      %1300 = vmatprep.subr.bf16.mxu0 0
      %1301 = vmatpush1.bf16.msra.mxu0 0
      %1302 = vmatprep.subr.bf16.mxu0 0
      %1303 = vmatpush1.bf16.msra.mxu0 0
      %1304 = vmatprep.subr.bf16.mxu0 0
      %1305 = vmatpush1.bf16.msra.mxu0 0
      %1306 = vmatprep.subr.bf16.mxu0 0
      %1307 = vmatpush1.bf16.msra.mxu0 0
      %1308 = vmatprep.subr.bf16.mxu0 0
      %1309 = vmatpush1.bf16.msra.mxu0 0
      %1310 = vmatprep.subr.bf16.mxu0 0
      %1311 = vmatpush1.bf16.msra.mxu0 0
      %1312 = vmatprep.subr.bf16.mxu0 0
      %1313 = vmatpush1.bf16.msra.mxu0 %v1236
      %1314 = vmatprep.subr.bf16.mxu0 0
      %1315 = vmatpush1.bf16.msra.mxu0 %v1233
      %1316 = vmatprep.subr.bf16.mxu0 0
      %1317 = vmatpush2.bf16.msra.mxu0 0
      %1318 = vmatprep.subr.bf16.mxu0 0
      %1319 = vmatpush2.bf16.msra.mxu0 0
      %1320 = vmatprep.subr.bf16.mxu0 0
      %1321 = vmatpush2.bf16.msra.mxu0 0
      %1322 = vmatprep.subr.bf16.mxu0 0
      %1323 = vmatpush2.bf16.msra.mxu0 0
      %1324 = vmatprep.subr.bf16.mxu0 0
      %1325 = vmatpush2.bf16.msra.mxu0 0
      %1326 = vmatprep.subr.bf16.mxu0 0
      %1327 = vmatpush2.bf16.msra.mxu0 0
      %1328 = vmatprep.subr.bf16.mxu0 0
      %1329 = vmatpush2.bf16.msra.mxu0 0
      %1330 = vmatprep.subr.bf16.mxu0 0
      %1331 = vmatpush2.bf16.msra.mxu0 0
      %1332 = vmatprep.mubr.bf16.mxu0 0
      %1333 = vmatmul.mubr.bf16.gmra.mxu0 %v1255
      %v1334 = vpop.f32.mrf.mxu0
      %v1335 = vadd.f32 %v1242, %v1334
      %v1336 = vpop.f32.mrf.mxu0
      %v1337 = vpop.f32.mrf.mxu0
      %v1338 = vadd.f32 %v1247, %v1337
      %v1339 = vpop.f32.mrf.mxu0
      %1340 = vdwg.mxu0
      %v1341 = vmax.f32 %v1296, -30.0
      %v1342 = vmax.f32 %v1298, -30.0
      %v1343 = vmax.f32 %v1338, -30.0
      %v1344 = vmin.f32 %v1341, 20.0
      %v1345 = vmin.f32 %v1342, 20.0
      %v1346 = vmin.f32 %v1343, 20.0
      %v1347 = vmul.f32 %v1344, 0.5
      %v1348 = vmul.f32 %v1345, 0.5
      %v1349 = vmul.f32 %v1346, 0.5
      %v1350 = vmul.f32 %v1347, 1.442695
      %v1351 = vpow.pop %v1350
      %v1352 = vmul.f32 %v1348, 1.442695
      %v1353 = vpow.pop %v1352
      %v1354 = vmul.f32 %v1349, 1.442695
      %v1355 = vpow.pop %v1354
      %s1356 = scalar_lea.vmem %s276, 12
      %v1357 = vld [vmem:[%s1356] sm:$0xff]
      %v1358 = vld [vmem:[%s1356 + $0x8] sm:$0xf]
      %v1359 = vunpack.c.l.bf16 %v1357
      %v1360 = vunpack.c.h.bf16 %v1357
      %v1361 = vunpack.c.l.bf16 %v1358
      %v1362 = vmul.f32 %v1359, %v1351
      %v1363 = vmul.f32 %v1360, %v1353
      %v1364 = vmul.f32 %v1361, %v1355
      %v1365 = vadd.f32 %v1292, %v1362
      %v1366 = vadd.f32 %v1294, %v1363
      %v1367 = vadd.f32 %v1335, %v1364
      %1369 = vrot.lane.b32.xlu0 %v1365, 126
      %v1370 = vpop.permute.xlu0 %1369
      %1372 = vrot.lane.b32.xlu0 %v1365, 124
      %v1373 = vpop.permute.xlu0 %1372
      %1375 = vrot.lane.b32.xlu0 %v1365, 122
      %v1376 = vpop.permute.xlu0 %1375
      %1378 = vrot.lane.b32.xlu0 %v1365, 120
      %v1379 = vpop.permute.xlu0 %1378
      %1381 = vrot.lane.b32.xlu0 %v1365, 118
      %v1382 = vpop.permute.xlu0 %1381
      %1384 = vrot.lane.b32.xlu0 %v1365, 116
      %v1385 = vpop.permute.xlu0 %1384
      %1388 = vrot.lane.b32.xlu0 %v1365, 114
      %v1389 = vpop.permute.xlu0 %1388
      %1390 = vrot.lane.b32.xlu0 %v1366, 114
      %v1391 = vpop.permute.xlu0 %1390
      %v1392 = vsel %vm817, %v1389, %v1391
      %1394 = vrot.lane.b32.xlu0 %v1366, 112
      %v1395 = vpop.permute.xlu0 %1394
      %1397 = vrot.lane.b32.xlu0 %v1366, 110
      %v1398 = vpop.permute.xlu0 %1397
      %1400 = vrot.lane.b32.xlu0 %v1366, 108
      %v1401 = vpop.permute.xlu0 %1400
      %1403 = vrot.lane.b32.xlu0 %v1366, 106
      %v1404 = vpop.permute.xlu0 %1403
      %1406 = vrot.lane.b32.xlu0 %v1366, 104
      %v1407 = vpop.permute.xlu0 %1406
      %1409 = vrot.lane.b32.xlu0 %v1366, 102
      %v1410 = vpop.permute.xlu0 %1409
      %1413 = vrot.lane.b32.xlu0 %v1366, 100
      %v1414 = vpop.permute.xlu0 %1413
      %1415 = vrot.lane.b32.xlu0 %v1367, 100
      %v1416 = vpop.permute.xlu0 %1415
      %v1417 = vsel %vm843, %v1414, %v1416
      %1419 = vrot.lane.b32.xlu0 %v1367, 98
      %v1420 = vpop.permute.xlu0 %1419
      %v1422 = vsel %vm849, %v1365, %v1370
      %v1423 = vsel %vm679, %v1422, %v1373
      %v1424 = vsel %vm852, %v1423, %v1376
      %v1425 = vsel %vm854, %v1424, %v1379
      %v1426 = vsel %vm856, %v1425, %v1382
      %v1427 = vsel %vm858, %v1426, %v1385
      %v1428 = vsel %vm860, %v1427, %v1392
      %v1429 = vsel %vm849, %v1395, %v1398
      %v1430 = vsel %vm679, %v1429, %v1401
      %v1431 = vsel %vm852, %v1430, %v1404
      %v1432 = vsel %vm854, %v1431, %v1407
      %v1433 = vsel %vm856, %v1432, %v1410
      %v1434 = vsel %vm858, %v1433, %v1417
      %v1435 = vsel %vm860, %v1434, %v1420
      %s1436 = scalar_lea.vmem %s283, 16
      %1437 = vst [vmem:[%s1436] sm:$0xff] %v1428
      %1438 = vst [vmem:[%s1436 + $0x8] sm:$0xff] %v1435
      %s1439 = scalar_lea.vmem %s269, 12
      %v1440 = vld [vmem:[%s1439] sm:$0x3f]
      %v1441 = vunpack.c.l.bf16 %v1440
      %v1442 = vunpack.c.h.bf16 %v1440
      %v1445 = vcombine.high %v1441, %v1441
      %v1447 = vcombine.low %v1441, %v1441
      %v1448 = vcombine.low %v1442, %v1442
      %1449 = vrot.lane.b32.xlu0 %v1447, 127
      %v1450 = vpop.permute.xlu0 %1449
      %1451 = vrot.lane.b32.xlu0 %v1441, 127
      %v1452 = vpop.permute.xlu0 %1451
      %1453 = vrot.lane.b32.xlu0 %v1448, 127
      %v1454 = vpop.permute.xlu0 %1453
      %v1455 = vsel %vm301, %v1450, %v1452
      %v1456 = vsel %vm301, %v1452, %v1454
      %1460 = vrot.lane.b32.xlu0 %v1441, 126
      %v1461 = vpop.permute.xlu0 %1460
      %1462 = vrot.lane.b32.xlu0 %v1445, 126
      %v1463 = vpop.permute.xlu0 %1462
      %1464 = vrot.lane.b32.xlu0 %v1442, 126
      %v1465 = vpop.permute.xlu0 %1464
      %v1466 = vsel %vm313, %v1461, %v1463
      %v1467 = vsel %vm313, %v1463, %v1465
      %1471 = vrot.lane.b32.xlu0 %v1447, 110
      %v1472 = vpop.permute.xlu0 %1471
      %1473 = vrot.lane.b32.xlu0 %v1441, 110
      %v1474 = vpop.permute.xlu0 %1473
      %1475 = vrot.lane.b32.xlu0 %v1448, 110
      %v1476 = vpop.permute.xlu0 %1475
      %v1477 = vsel %vm325, %v1472, %v1474
      %v1478 = vsel %vm325, %v1474, %v1476
      %1482 = vrot.lane.b32.xlu0 %v1441, 109
      %v1483 = vpop.permute.xlu0 %1482
      %1484 = vrot.lane.b32.xlu0 %v1445, 109
      %v1485 = vpop.permute.xlu0 %1484
      %1486 = vrot.lane.b32.xlu0 %v1442, 109
      %v1487 = vpop.permute.xlu0 %1486
      %v1488 = vsel %vm337, %v1483, %v1485
      %v1489 = vsel %vm337, %v1485, %v1487
      %1493 = vrot.lane.b32.xlu0 %v1447, 108
      %v1494 = vpop.permute.xlu0 %1493
      %1495 = vrot.lane.b32.xlu0 %v1441, 108
      %v1496 = vpop.permute.xlu0 %1495
      %1497 = vrot.lane.b32.xlu0 %v1448, 108
      %v1498 = vpop.permute.xlu0 %1497
      %v1499 = vsel %vm349, %v1494, %v1496
      %v1500 = vsel %vm349, %v1496, %v1498
      %1504 = vrot.lane.b32.xlu0 %v1441, 92
      %v1505 = vpop.permute.xlu0 %1504
      %1506 = vrot.lane.b32.xlu0 %v1445, 92
      %v1507 = vpop.permute.xlu0 %1506
      %1508 = vrot.lane.b32.xlu0 %v1442, 92
      %v1509 = vpop.permute.xlu0 %1508
      %v1510 = vsel %vm361, %v1505, %v1507
      %v1511 = vsel %vm361, %v1507, %v1509
      %1515 = vrot.lane.b32.xlu0 %v1447, 91
      %v1516 = vpop.permute.xlu0 %1515
      %1517 = vrot.lane.b32.xlu0 %v1441, 91
      %v1518 = vpop.permute.xlu0 %1517
      %1519 = vrot.lane.b32.xlu0 %v1448, 91
      %v1520 = vpop.permute.xlu0 %1519
      %v1521 = vsel %vm373, %v1516, %v1518
      %v1522 = vsel %vm373, %v1518, %v1520
      %1526 = vrot.lane.b32.xlu0 %v1441, 90
      %v1527 = vpop.permute.xlu0 %1526
      %1528 = vrot.lane.b32.xlu0 %v1445, 90
      %v1529 = vpop.permute.xlu0 %1528
      %1530 = vrot.lane.b32.xlu0 %v1442, 90
      %v1531 = vpop.permute.xlu0 %1530
      %v1532 = vsel %vm385, %v1527, %v1529
      %v1533 = vsel %vm385, %v1529, %v1531
      %v1537 = vsel %vm391, %v1441, %v1455
      %v1538 = vsel %vm391, %v1445, %v1456
      %v1539 = vsel %vm391, %v1442, %v1454
      %v1540 = vsel %vm391, %v1466, %v1477
      %v1541 = vsel %vm391, %v1467, %v1478
      %v1542 = vsel %vm391, %v1465, %v1476
      %v1543 = vsel %vm391, %v1488, %v1499
      %v1544 = vsel %vm391, %v1489, %v1500
      %v1545 = vsel %vm391, %v1487, %v1498
      %v1546 = vsel %vm391, %v1510, %v1521
      %v1547 = vsel %vm391, %v1511, %v1522
      %v1548 = vsel %vm391, %v1509, %v1520
      %v1549 = vpack.c.bf16 %v1540, %v1537
      %v1550 = vpack.c.bf16 %v1541, %v1538
      %v1551 = vpack.c.bf16 %v1542, %v1539
      %v1552 = vpack.c.bf16 %v1546, %v1543
      %v1553 = vpack.c.bf16 %v1547, %v1544
      %v1554 = vpack.c.bf16 %v1548, %v1545
      %v1555 = vpack.c.bf16 %v1532, %v1532
      %v1556 = vpack.c.bf16 %v1533, %v1533
      %v1557 = vpack.c.bf16 %v1531, %v1531
      %v1558 = vld [vmem:[%s1] sm:$0xf]
      %v1559 = vld [vmem:[%s1 + $0x4] sm:$0xf]
      %v1560 = vld [vmem:[%s1 + $0x8] sm:$0xf]
      %v1561 = vld [vmem:[%s1 + $0xc] sm:$0xf]
      %v1562 = vld [vmem:[%s2] sm:$0xff]
      %v1563 = vld [vmem:[%s2 + $0x8] sm:$0xff]
      %v1564 = vld [vmem:[%s2 + $0x10] sm:$0xff]
      %v1565 = vld [vmem:[%s2 + $0x18] sm:$0xff]
      %1567 = vset.pattern.permute.xlu0 0
      %1568 = vperm.xlu0 %1567, %v1562
      %v1569 = vpop.permute.xlu0 %1568
      %1572 = vset.pattern.permute.xlu0 0
      %1573 = vperm.xlu0 %1572, %v1563
      %v1574 = vpop.permute.xlu0 %1573
      %1577 = vset.pattern.permute.xlu0 0
      %1578 = vperm.xlu0 %1577, %v1564
      %v1579 = vpop.permute.xlu0 %1578
      %1582 = vset.pattern.permute.xlu0 0
      %1583 = vperm.xlu0 %1582, %v1565
      %v1584 = vpop.permute.xlu0 %1583
      %v1590 = vunpack.c.l.b16 %v1558
      %v1591 = vunpack.c.l.b16 %v1559
      %v1592 = vunpack.c.l.b16 %v1560
      %v1593 = vunpack.c.l.b16 %v1561
      %v1594 = vpack.c.b16 %v1591, %v1590
      %v1595 = vpack.c.b16 %v1593, %v1592
      %v1597 = vsel %vm451, %v1594, 0
      %v1600 = vsel %vm451, %v1595, 0
      %v1603 = vsel %vm458, %v1555, 0
      %v1606 = vsel %vm458, %v1556, 0
      %v1609 = vsel %vm458, %v1557, 0
      %1611 = vmatprep.subr.bf16.mxu0 0
      %1612 = vmatpush1.bf16.msra.mxu0 0
      %1613 = vmatprep.subr.bf16.mxu0 0
      %1614 = vmatpush1.bf16.msra.mxu0 0
      %1615 = vmatprep.subr.bf16.mxu0 0
      %1616 = vmatpush1.bf16.msra.mxu0 0
      %1617 = vmatprep.subr.bf16.mxu0 0
      %1618 = vmatpush1.bf16.msra.mxu0 0
      %1619 = vmatprep.subr.bf16.mxu0 0
      %1620 = vmatpush1.bf16.msra.mxu0 0
      %1621 = vmatprep.subr.bf16.mxu0 %v1606
      %1622 = vmatpush1.bf16.msra.mxu0 %v1603
      %1623 = vmatprep.subr.bf16.mxu0 %v1553
      %1624 = vmatpush1.bf16.msra.mxu0 %v1552
      %1625 = vmatprep.subr.bf16.mxu0 %v1550
      %1626 = vmatpush1.bf16.msra.mxu0 %v1549
      %1627 = vmatprep.subr.bf16.mxu0 0
      %1628 = vmatpush2.bf16.msra.mxu0 0
      %1629 = vmatprep.subr.bf16.mxu0 0
      %1630 = vmatpush2.bf16.msra.mxu0 0
      %1631 = vmatprep.subr.bf16.mxu0 0
      %1632 = vmatpush2.bf16.msra.mxu0 0
      %1633 = vmatprep.subr.bf16.mxu0 0
      %1634 = vmatpush2.bf16.msra.mxu0 0
      %1635 = vmatprep.subr.bf16.mxu0 0
      %1636 = vmatpush2.bf16.msra.mxu0 0
      %1637 = vmatprep.subr.bf16.mxu0 0
      %1638 = vmatpush2.bf16.msra.mxu0 0
      %1639 = vmatprep.subr.bf16.mxu0 0
      %1640 = vmatpush2.bf16.msra.mxu0 0
      %1641 = vmatprep.subr.bf16.mxu0 0
      %1642 = vmatpush2.bf16.msra.mxu0 0
      %1643 = vmatprep.mubr.bf16.mxu0 0
      %1644 = vmatmul.mubr.bf16.gmra.mxu0 %v1597
      %v1645 = vpop.f32.mrf.mxu0
      %v1646 = vadd.f32 %v1569, %v1645
      %v1647 = vpop.f32.mrf.mxu0
      %v1648 = vadd.f32 %v1569, %v1647
      %v1649 = vpop.f32.mrf.mxu0
      %v1650 = vadd.f32 %v1574, %v1649
      %v1651 = vpop.f32.mrf.mxu0
      %v1652 = vadd.f32 %v1574, %v1651
      %1653 = vmatprep.mubr.bf16.mxu0 0
      %1654 = vmatmul.mubr.bf16.gmra.mxu0 %v1600
      %v1655 = vpop.f32.mrf.mxu0
      %v1656 = vadd.f32 %v1579, %v1655
      %v1657 = vpop.f32.mrf.mxu0
      %v1658 = vadd.f32 %v1579, %v1657
      %v1659 = vpop.f32.mrf.mxu0
      %v1660 = vadd.f32 %v1584, %v1659
      %v1661 = vpop.f32.mrf.mxu0
      %v1662 = vadd.f32 %v1584, %v1661
      %1663 = vdwg.mxu0
      %1664 = vmatprep.subr.bf16.mxu0 0
      %1665 = vmatpush1.bf16.msra.mxu0 0
      %1666 = vmatprep.subr.bf16.mxu0 0
      %1667 = vmatpush1.bf16.msra.mxu0 0
      %1668 = vmatprep.subr.bf16.mxu0 0
      %1669 = vmatpush1.bf16.msra.mxu0 0
      %1670 = vmatprep.subr.bf16.mxu0 0
      %1671 = vmatpush1.bf16.msra.mxu0 0
      %1672 = vmatprep.subr.bf16.mxu0 0
      %1673 = vmatpush1.bf16.msra.mxu0 0
      %1674 = vmatprep.subr.bf16.mxu0 0
      %1675 = vmatpush1.bf16.msra.mxu0 %v1609
      %1676 = vmatprep.subr.bf16.mxu0 0
      %1677 = vmatpush1.bf16.msra.mxu0 %v1554
      %1678 = vmatprep.subr.bf16.mxu0 0
      %1679 = vmatpush1.bf16.msra.mxu0 %v1551
      %1680 = vmatprep.subr.bf16.mxu0 0
      %1681 = vmatpush2.bf16.msra.mxu0 0
      %1682 = vmatprep.subr.bf16.mxu0 0
      %1683 = vmatpush2.bf16.msra.mxu0 0
      %1684 = vmatprep.subr.bf16.mxu0 0
      %1685 = vmatpush2.bf16.msra.mxu0 0
      %1686 = vmatprep.subr.bf16.mxu0 0
      %1687 = vmatpush2.bf16.msra.mxu0 0
      %1688 = vmatprep.subr.bf16.mxu0 0
      %1689 = vmatpush2.bf16.msra.mxu0 0
      %1690 = vmatprep.subr.bf16.mxu0 0
      %1691 = vmatpush2.bf16.msra.mxu0 0
      %1692 = vmatprep.subr.bf16.mxu0 0
      %1693 = vmatpush2.bf16.msra.mxu0 0
      %1694 = vmatprep.subr.bf16.mxu0 0
      %1695 = vmatpush2.bf16.msra.mxu0 0
      %1696 = vmatprep.mubr.bf16.mxu0 0
      %1697 = vmatmul.mubr.bf16.gmra.mxu0 %v1597
      %v1698 = vpop.f32.mrf.mxu0
      %v1699 = vadd.f32 %v1569, %v1698
      %v1700 = vpop.f32.mrf.mxu0
      %v1701 = vpop.f32.mrf.mxu0
      %v1702 = vadd.f32 %v1574, %v1701
      %v1703 = vpop.f32.mrf.mxu0
      %1704 = vmatprep.mubr.bf16.mxu0 0
      %1705 = vmatmul.mubr.bf16.gmra.mxu0 %v1600
      %v1706 = vpop.f32.mrf.mxu0
      %v1707 = vadd.f32 %v1579, %v1706
      %v1708 = vpop.f32.mrf.mxu0
      %v1709 = vpop.f32.mrf.mxu0
      %v1710 = vadd.f32 %v1584, %v1709
      %v1711 = vpop.f32.mrf.mxu0
      %1712 = vdwg.mxu0
      %v1713 = vxor.u32 %v1646, 2147483648
      %v1714 = vxor.u32 %v1648, 2147483648
      %v1715 = vxor.u32 %v1699, 2147483648
      %v1716 = vxor.u32 %v1650, 2147483648
      %v1717 = vxor.u32 %v1652, 2147483648
      %v1718 = vxor.u32 %v1702, 2147483648
      %v1719 = vxor.u32 %v1656, 2147483648
      %v1720 = vxor.u32 %v1658, 2147483648
      %v1721 = vxor.u32 %v1707, 2147483648
      %v1722 = vxor.u32 %v1660, 2147483648
      %v1723 = vxor.u32 %v1662, 2147483648
      %v1724 = vxor.u32 %v1710, 2147483648
      %v1725 = vmul.f32 %v1713, 1.442695
      %v1726 = vpow.pop %v1725
      %v1727 = vmul.f32 %v1714, 1.442695
      %v1728 = vpow.pop %v1727
      %v1729 = vmul.f32 %v1715, 1.442695
      %v1730 = vpow.pop %v1729
      %v1731 = vmul.f32 %v1716, 1.442695
      %v1732 = vpow.pop %v1731
      %v1733 = vmul.f32 %v1717, 1.442695
      %v1734 = vpow.pop %v1733
      %v1735 = vmul.f32 %v1718, 1.442695
      %v1736 = vpow.pop %v1735
      %v1737 = vmul.f32 %v1719, 1.442695
      %v1738 = vpow.pop %v1737
      %v1739 = vmul.f32 %v1720, 1.442695
      %v1740 = vpow.pop %v1739
      %v1741 = vmul.f32 %v1721, 1.442695
      %v1742 = vpow.pop %v1741
      %v1743 = vmul.f32 %v1722, 1.442695
      %v1744 = vpow.pop %v1743
      %v1745 = vmul.f32 %v1723, 1.442695
      %v1746 = vpow.pop %v1745
      %v1747 = vmul.f32 %v1724, 1.442695
      %v1748 = vpow.pop %v1747
      %v1749 = vadd.f32 %v1726, 1.0
      %v1750 = vadd.f32 %v1728, 1.0
      %v1751 = vadd.f32 %v1730, 1.0
      %v1752 = vadd.f32 %v1732, 1.0
      %v1753 = vadd.f32 %v1734, 1.0
      %v1754 = vadd.f32 %v1736, 1.0
      %v1755 = vadd.f32 %v1738, 1.0
      %v1756 = vadd.f32 %v1740, 1.0
      %v1757 = vadd.f32 %v1742, 1.0
      %v1758 = vadd.f32 %v1744, 1.0
      %v1759 = vadd.f32 %v1746, 1.0
      %v1760 = vadd.f32 %v1748, 1.0
      %v1761 = vrcp.pop %v1749
      %v1762 = vmul.f32 1.0, %v1761
      %v1763 = vrcp.pop %v1750
      %v1764 = vmul.f32 1.0, %v1763
      %v1765 = vrcp.pop %v1751
      %v1766 = vmul.f32 1.0, %v1765
      %v1767 = vrcp.pop %v1752
      %v1768 = vmul.f32 1.0, %v1767
      %v1769 = vrcp.pop %v1753
      %v1770 = vmul.f32 1.0, %v1769
      %v1771 = vrcp.pop %v1754
      %v1772 = vmul.f32 1.0, %v1771
      %v1773 = vrcp.pop %v1755
      %v1774 = vmul.f32 1.0, %v1773
      %v1775 = vrcp.pop %v1756
      %v1776 = vmul.f32 1.0, %v1775
      %v1777 = vrcp.pop %v1757
      %v1778 = vmul.f32 1.0, %v1777
      %v1779 = vrcp.pop %v1758
      %v1780 = vmul.f32 1.0, %v1779
      %v1781 = vrcp.pop %v1759
      %v1782 = vmul.f32 1.0, %v1781
      %v1783 = vrcp.pop %v1760
      %v1784 = vmul.f32 1.0, %v1783
      %v1785 = vmul.f32 %v1646, %v1762
      %v1786 = vmul.f32 %v1648, %v1764
      %v1787 = vmul.f32 %v1699, %v1766
      %v1788 = vmul.f32 %v1650, %v1768
      %v1789 = vmul.f32 %v1652, %v1770
      %v1790 = vmul.f32 %v1702, %v1772
      %v1791 = vmul.f32 %v1656, %v1774
      %v1792 = vmul.f32 %v1658, %v1776
      %v1793 = vmul.f32 %v1707, %v1778
      %v1794 = vmul.f32 %v1660, %v1780
      %v1795 = vmul.f32 %v1662, %v1782
      %v1796 = vmul.f32 %v1710, %v1784
      %v1797 = vld [vmem:[%s3] sm:$0xf]
      %v1798 = vld [vmem:[%s3 + $0x4] sm:$0xf]
      %v1799 = vpack.c.bf16 %v1788, %v1785
      %v1800 = vpack.c.bf16 %v1789, %v1786
      %v1801 = vpack.c.bf16 %v1790, %v1787
      %v1802 = vpack.c.bf16 %v1794, %v1791
      %v1803 = vpack.c.bf16 %v1795, %v1792
      %v1804 = vpack.c.bf16 %v1796, %v1793
      %v1805 = vld [vmem:[%s4] sm:$0xff]
      %v1806 = vld [vmem:[%s4 + $0x8] sm:$0xff]
      %1808 = vset.pattern.permute.xlu0 0
      %1809 = vperm.xlu0 %1808, %v1805
      %v1810 = vpop.permute.xlu0 %1809
      %1813 = vset.pattern.permute.xlu0 0
      %1814 = vperm.xlu0 %1813, %v1806
      %v1815 = vpop.permute.xlu0 %1814
      %v1819 = vunpack.c.l.b16 %v1797
      %v1820 = vunpack.c.l.b16 %v1798
      %v1821 = vpack.c.b16 %v1820, %v1819
      %v1823 = vsel %vm679, %v1821, 0
      %1825 = vmatprep.subr.bf16.mxu0 0
      %1826 = vmatpush1.bf16.msra.mxu0 0
      %1827 = vmatprep.subr.bf16.mxu0 0
      %1828 = vmatpush1.bf16.msra.mxu0 0
      %1829 = vmatprep.subr.bf16.mxu0 0
      %1830 = vmatpush1.bf16.msra.mxu0 0
      %1831 = vmatprep.subr.bf16.mxu0 0
      %1832 = vmatpush1.bf16.msra.mxu0 0
      %1833 = vmatprep.subr.bf16.mxu0 0
      %1834 = vmatpush1.bf16.msra.mxu0 0
      %1835 = vmatprep.subr.bf16.mxu0 0
      %1836 = vmatpush1.bf16.msra.mxu0 0
      %1837 = vmatprep.subr.bf16.mxu0 %v1803
      %1838 = vmatpush1.bf16.msra.mxu0 %v1802
      %1839 = vmatprep.subr.bf16.mxu0 %v1800
      %1840 = vmatpush1.bf16.msra.mxu0 %v1799
      %1841 = vmatprep.subr.bf16.mxu0 0
      %1842 = vmatpush2.bf16.msra.mxu0 0
      %1843 = vmatprep.subr.bf16.mxu0 0
      %1844 = vmatpush2.bf16.msra.mxu0 0
      %1845 = vmatprep.subr.bf16.mxu0 0
      %1846 = vmatpush2.bf16.msra.mxu0 0
      %1847 = vmatprep.subr.bf16.mxu0 0
      %1848 = vmatpush2.bf16.msra.mxu0 0
      %1849 = vmatprep.subr.bf16.mxu0 0
      %1850 = vmatpush2.bf16.msra.mxu0 0
      %1851 = vmatprep.subr.bf16.mxu0 0
      %1852 = vmatpush2.bf16.msra.mxu0 0
      %1853 = vmatprep.subr.bf16.mxu0 0
      %1854 = vmatpush2.bf16.msra.mxu0 0
      %1855 = vmatprep.subr.bf16.mxu0 0
      %1856 = vmatpush2.bf16.msra.mxu0 0
      %1857 = vmatprep.mubr.bf16.mxu0 0
      %1858 = vmatmul.mubr.bf16.gmra.mxu0 %v1823
      %v1859 = vpop.f32.mrf.mxu0
      %v1860 = vadd.f32 %v1810, %v1859
      %v1861 = vpop.f32.mrf.mxu0
      %v1862 = vadd.f32 %v1810, %v1861
      %v1863 = vpop.f32.mrf.mxu0
      %v1864 = vadd.f32 %v1815, %v1863
      %v1865 = vpop.f32.mrf.mxu0
      %v1866 = vadd.f32 %v1815, %v1865
      %1867 = vdwg.mxu0
      %1868 = vmatprep.subr.bf16.mxu0 0
      %1869 = vmatpush1.bf16.msra.mxu0 0
      %1870 = vmatprep.subr.bf16.mxu0 0
      %1871 = vmatpush1.bf16.msra.mxu0 0
      %1872 = vmatprep.subr.bf16.mxu0 0
      %1873 = vmatpush1.bf16.msra.mxu0 0
      %1874 = vmatprep.subr.bf16.mxu0 0
      %1875 = vmatpush1.bf16.msra.mxu0 0
      %1876 = vmatprep.subr.bf16.mxu0 0
      %1877 = vmatpush1.bf16.msra.mxu0 0
      %1878 = vmatprep.subr.bf16.mxu0 0
      %1879 = vmatpush1.bf16.msra.mxu0 0
      %1880 = vmatprep.subr.bf16.mxu0 0
      %1881 = vmatpush1.bf16.msra.mxu0 %v1804
      %1882 = vmatprep.subr.bf16.mxu0 0
      %1883 = vmatpush1.bf16.msra.mxu0 %v1801
      %1884 = vmatprep.subr.bf16.mxu0 0
      %1885 = vmatpush2.bf16.msra.mxu0 0
      %1886 = vmatprep.subr.bf16.mxu0 0
      %1887 = vmatpush2.bf16.msra.mxu0 0
      %1888 = vmatprep.subr.bf16.mxu0 0
      %1889 = vmatpush2.bf16.msra.mxu0 0
      %1890 = vmatprep.subr.bf16.mxu0 0
      %1891 = vmatpush2.bf16.msra.mxu0 0
      %1892 = vmatprep.subr.bf16.mxu0 0
      %1893 = vmatpush2.bf16.msra.mxu0 0
      %1894 = vmatprep.subr.bf16.mxu0 0
      %1895 = vmatpush2.bf16.msra.mxu0 0
      %1896 = vmatprep.subr.bf16.mxu0 0
      %1897 = vmatpush2.bf16.msra.mxu0 0
      %1898 = vmatprep.subr.bf16.mxu0 0
      %1899 = vmatpush2.bf16.msra.mxu0 0
      %1900 = vmatprep.mubr.bf16.mxu0 0
      %1901 = vmatmul.mubr.bf16.gmra.mxu0 %v1823
      %v1902 = vpop.f32.mrf.mxu0
      %v1903 = vadd.f32 %v1810, %v1902
      %v1904 = vpop.f32.mrf.mxu0
      %v1905 = vpop.f32.mrf.mxu0
      %v1906 = vadd.f32 %v1815, %v1905
      %v1907 = vpop.f32.mrf.mxu0
      %1908 = vdwg.mxu0
      %v1909 = vmax.f32 %v1864, -30.0
      %v1910 = vmax.f32 %v1866, -30.0
      %v1911 = vmax.f32 %v1906, -30.0
      %v1912 = vmin.f32 %v1909, 20.0
      %v1913 = vmin.f32 %v1910, 20.0
      %v1914 = vmin.f32 %v1911, 20.0
      %v1915 = vmul.f32 %v1912, 0.5
      %v1916 = vmul.f32 %v1913, 0.5
      %v1917 = vmul.f32 %v1914, 0.5
      %v1918 = vmul.f32 %v1915, 1.442695
      %v1919 = vpow.pop %v1918
      %v1920 = vmul.f32 %v1916, 1.442695
      %v1921 = vpow.pop %v1920
      %v1922 = vmul.f32 %v1917, 1.442695
      %v1923 = vpow.pop %v1922
      %s1924 = scalar_lea.vmem %s276, 24
      %v1925 = vld [vmem:[%s1924] sm:$0xff]
      %v1926 = vld [vmem:[%s1924 + $0x8] sm:$0xf]
      %v1927 = vunpack.c.l.bf16 %v1925
      %v1928 = vunpack.c.h.bf16 %v1925
      %v1929 = vunpack.c.l.bf16 %v1926
      %v1930 = vmul.f32 %v1927, %v1919
      %v1931 = vmul.f32 %v1928, %v1921
      %v1932 = vmul.f32 %v1929, %v1923
      %v1933 = vadd.f32 %v1860, %v1930
      %v1934 = vadd.f32 %v1862, %v1931
      %v1935 = vadd.f32 %v1903, %v1932
      %1937 = vrot.lane.b32.xlu0 %v1933, 126
      %v1938 = vpop.permute.xlu0 %1937
      %1940 = vrot.lane.b32.xlu0 %v1933, 124
      %v1941 = vpop.permute.xlu0 %1940
      %1943 = vrot.lane.b32.xlu0 %v1933, 122
      %v1944 = vpop.permute.xlu0 %1943
      %1946 = vrot.lane.b32.xlu0 %v1933, 120
      %v1947 = vpop.permute.xlu0 %1946
      %1949 = vrot.lane.b32.xlu0 %v1933, 118
      %v1950 = vpop.permute.xlu0 %1949
      %1952 = vrot.lane.b32.xlu0 %v1933, 116
      %v1953 = vpop.permute.xlu0 %1952
      %1956 = vrot.lane.b32.xlu0 %v1933, 114
      %v1957 = vpop.permute.xlu0 %1956
      %1958 = vrot.lane.b32.xlu0 %v1934, 114
      %v1959 = vpop.permute.xlu0 %1958
      %v1960 = vsel %vm817, %v1957, %v1959
      %1962 = vrot.lane.b32.xlu0 %v1934, 112
      %v1963 = vpop.permute.xlu0 %1962
      %1965 = vrot.lane.b32.xlu0 %v1934, 110
      %v1966 = vpop.permute.xlu0 %1965
      %1968 = vrot.lane.b32.xlu0 %v1934, 108
      %v1969 = vpop.permute.xlu0 %1968
      %1971 = vrot.lane.b32.xlu0 %v1934, 106
      %v1972 = vpop.permute.xlu0 %1971
      %1974 = vrot.lane.b32.xlu0 %v1934, 104
      %v1975 = vpop.permute.xlu0 %1974
      %1977 = vrot.lane.b32.xlu0 %v1934, 102
      %v1978 = vpop.permute.xlu0 %1977
      %1981 = vrot.lane.b32.xlu0 %v1934, 100
      %v1982 = vpop.permute.xlu0 %1981
      %1983 = vrot.lane.b32.xlu0 %v1935, 100
      %v1984 = vpop.permute.xlu0 %1983
      %v1985 = vsel %vm843, %v1982, %v1984
      %1987 = vrot.lane.b32.xlu0 %v1935, 98
      %v1988 = vpop.permute.xlu0 %1987
      %v1990 = vsel %vm849, %v1933, %v1938
      %v1991 = vsel %vm679, %v1990, %v1941
      %v1992 = vsel %vm852, %v1991, %v1944
      %v1993 = vsel %vm854, %v1992, %v1947
      %v1994 = vsel %vm856, %v1993, %v1950
      %v1995 = vsel %vm858, %v1994, %v1953
      %v1996 = vsel %vm860, %v1995, %v1960
      %v1997 = vsel %vm849, %v1963, %v1966
      %v1998 = vsel %vm679, %v1997, %v1969
      %v1999 = vsel %vm852, %v1998, %v1972
      %v2000 = vsel %vm854, %v1999, %v1975
      %v2001 = vsel %vm856, %v2000, %v1978
      %v2002 = vsel %vm858, %v2001, %v1985
      %v2003 = vsel %vm860, %v2002, %v1988
      %s2004 = scalar_lea.vmem %s283, 32
      %2005 = vst [vmem:[%s2004] sm:$0xff] %v1996
      %2006 = vst [vmem:[%s2004 + $0x8] sm:$0xff] %v2003
      %s2007 = scalar_lea.vmem %s269, 18
      %v2008 = vld [vmem:[%s2007] sm:$0x3f]
      %v2009 = vunpack.c.l.bf16 %v2008
      %v2010 = vunpack.c.h.bf16 %v2008
      %v2013 = vcombine.high %v2009, %v2009
      %v2015 = vcombine.low %v2009, %v2009
      %v2016 = vcombine.low %v2010, %v2010
      %2017 = vrot.lane.b32.xlu0 %v2015, 127
      %v2018 = vpop.permute.xlu0 %2017
      %2019 = vrot.lane.b32.xlu0 %v2009, 127
      %v2020 = vpop.permute.xlu0 %2019
      %2021 = vrot.lane.b32.xlu0 %v2016, 127
      %v2022 = vpop.permute.xlu0 %2021
      %v2023 = vsel %vm301, %v2018, %v2020
      %v2024 = vsel %vm301, %v2020, %v2022
      %2028 = vrot.lane.b32.xlu0 %v2009, 126
      %v2029 = vpop.permute.xlu0 %2028
      %2030 = vrot.lane.b32.xlu0 %v2013, 126
      %v2031 = vpop.permute.xlu0 %2030
      %2032 = vrot.lane.b32.xlu0 %v2010, 126
      %v2033 = vpop.permute.xlu0 %2032
      %v2034 = vsel %vm313, %v2029, %v2031
      %v2035 = vsel %vm313, %v2031, %v2033
      %2039 = vrot.lane.b32.xlu0 %v2015, 110
      %v2040 = vpop.permute.xlu0 %2039
      %2041 = vrot.lane.b32.xlu0 %v2009, 110
      %v2042 = vpop.permute.xlu0 %2041
      %2043 = vrot.lane.b32.xlu0 %v2016, 110
      %v2044 = vpop.permute.xlu0 %2043
      %v2045 = vsel %vm325, %v2040, %v2042
      %v2046 = vsel %vm325, %v2042, %v2044
      %2050 = vrot.lane.b32.xlu0 %v2009, 109
      %v2051 = vpop.permute.xlu0 %2050
      %2052 = vrot.lane.b32.xlu0 %v2013, 109
      %v2053 = vpop.permute.xlu0 %2052
      %2054 = vrot.lane.b32.xlu0 %v2010, 109
      %v2055 = vpop.permute.xlu0 %2054
      %v2056 = vsel %vm337, %v2051, %v2053
      %v2057 = vsel %vm337, %v2053, %v2055
      %2061 = vrot.lane.b32.xlu0 %v2015, 108
      %v2062 = vpop.permute.xlu0 %2061
      %2063 = vrot.lane.b32.xlu0 %v2009, 108
      %v2064 = vpop.permute.xlu0 %2063
      %2065 = vrot.lane.b32.xlu0 %v2016, 108
      %v2066 = vpop.permute.xlu0 %2065
      %v2067 = vsel %vm349, %v2062, %v2064
      %v2068 = vsel %vm349, %v2064, %v2066
      %2072 = vrot.lane.b32.xlu0 %v2009, 92
      %v2073 = vpop.permute.xlu0 %2072
      %2074 = vrot.lane.b32.xlu0 %v2013, 92
      %v2075 = vpop.permute.xlu0 %2074
      %2076 = vrot.lane.b32.xlu0 %v2010, 92
      %v2077 = vpop.permute.xlu0 %2076
      %v2078 = vsel %vm361, %v2073, %v2075
      %v2079 = vsel %vm361, %v2075, %v2077
      %2083 = vrot.lane.b32.xlu0 %v2015, 91
      %v2084 = vpop.permute.xlu0 %2083
      %2085 = vrot.lane.b32.xlu0 %v2009, 91
      %v2086 = vpop.permute.xlu0 %2085
      %2087 = vrot.lane.b32.xlu0 %v2016, 91
      %v2088 = vpop.permute.xlu0 %2087
      %v2089 = vsel %vm373, %v2084, %v2086
      %v2090 = vsel %vm373, %v2086, %v2088
      %2094 = vrot.lane.b32.xlu0 %v2009, 90
      %v2095 = vpop.permute.xlu0 %2094
      %2096 = vrot.lane.b32.xlu0 %v2013, 90
      %v2097 = vpop.permute.xlu0 %2096
      %2098 = vrot.lane.b32.xlu0 %v2010, 90
      %v2099 = vpop.permute.xlu0 %2098
      %v2100 = vsel %vm385, %v2095, %v2097
      %v2101 = vsel %vm385, %v2097, %v2099
      %v2105 = vsel %vm391, %v2009, %v2023
      %v2106 = vsel %vm391, %v2013, %v2024
      %v2107 = vsel %vm391, %v2010, %v2022
      %v2108 = vsel %vm391, %v2034, %v2045
      %v2109 = vsel %vm391, %v2035, %v2046
      %v2110 = vsel %vm391, %v2033, %v2044
      %v2111 = vsel %vm391, %v2056, %v2067
      %v2112 = vsel %vm391, %v2057, %v2068
      %v2113 = vsel %vm391, %v2055, %v2066
      %v2114 = vsel %vm391, %v2078, %v2089
      %v2115 = vsel %vm391, %v2079, %v2090
      %v2116 = vsel %vm391, %v2077, %v2088
      %v2117 = vpack.c.bf16 %v2108, %v2105
      %v2118 = vpack.c.bf16 %v2109, %v2106
      %v2119 = vpack.c.bf16 %v2110, %v2107
      %v2120 = vpack.c.bf16 %v2114, %v2111
      %v2121 = vpack.c.bf16 %v2115, %v2112
      %v2122 = vpack.c.bf16 %v2116, %v2113
      %v2123 = vpack.c.bf16 %v2100, %v2100
      %v2124 = vpack.c.bf16 %v2101, %v2101
      %v2125 = vpack.c.bf16 %v2099, %v2099
      %v2126 = vld [vmem:[%s1] sm:$0xf]
      %v2127 = vld [vmem:[%s1 + $0x4] sm:$0xf]
      %v2128 = vld [vmem:[%s1 + $0x8] sm:$0xf]
      %v2129 = vld [vmem:[%s1 + $0xc] sm:$0xf]
      %v2130 = vld [vmem:[%s2] sm:$0xff]
      %v2131 = vld [vmem:[%s2 + $0x8] sm:$0xff]
      %v2132 = vld [vmem:[%s2 + $0x10] sm:$0xff]
      %v2133 = vld [vmem:[%s2 + $0x18] sm:$0xff]
      %2135 = vset.pattern.permute.xlu0 0
      %2136 = vperm.xlu0 %2135, %v2130
      %v2137 = vpop.permute.xlu0 %2136
      %2140 = vset.pattern.permute.xlu0 0
      %2141 = vperm.xlu0 %2140, %v2131
      %v2142 = vpop.permute.xlu0 %2141
      %2145 = vset.pattern.permute.xlu0 0
      %2146 = vperm.xlu0 %2145, %v2132
      %v2147 = vpop.permute.xlu0 %2146
      %2150 = vset.pattern.permute.xlu0 0
      %2151 = vperm.xlu0 %2150, %v2133
      %v2152 = vpop.permute.xlu0 %2151
      %v2158 = vunpack.c.l.b16 %v2126
      %v2159 = vunpack.c.l.b16 %v2127
      %v2160 = vunpack.c.l.b16 %v2128
      %v2161 = vunpack.c.l.b16 %v2129
      %v2162 = vpack.c.b16 %v2159, %v2158
      %v2163 = vpack.c.b16 %v2161, %v2160
      %v2165 = vsel %vm451, %v2162, 0
      %v2168 = vsel %vm451, %v2163, 0
      %v2171 = vsel %vm458, %v2123, 0
      %v2174 = vsel %vm458, %v2124, 0
      %v2177 = vsel %vm458, %v2125, 0
      %2179 = vmatprep.subr.bf16.mxu0 0
      %2180 = vmatpush1.bf16.msra.mxu0 0
      %2181 = vmatprep.subr.bf16.mxu0 0
      %2182 = vmatpush1.bf16.msra.mxu0 0
      %2183 = vmatprep.subr.bf16.mxu0 0
      %2184 = vmatpush1.bf16.msra.mxu0 0
      %2185 = vmatprep.subr.bf16.mxu0 0
      %2186 = vmatpush1.bf16.msra.mxu0 0
      %2187 = vmatprep.subr.bf16.mxu0 0
      %2188 = vmatpush1.bf16.msra.mxu0 0
      %2189 = vmatprep.subr.bf16.mxu0 %v2174
      %2190 = vmatpush1.bf16.msra.mxu0 %v2171
      %2191 = vmatprep.subr.bf16.mxu0 %v2121
      %2192 = vmatpush1.bf16.msra.mxu0 %v2120
      %2193 = vmatprep.subr.bf16.mxu0 %v2118
      %2194 = vmatpush1.bf16.msra.mxu0 %v2117
      %2195 = vmatprep.subr.bf16.mxu0 0
      %2196 = vmatpush2.bf16.msra.mxu0 0
      %2197 = vmatprep.subr.bf16.mxu0 0
      %2198 = vmatpush2.bf16.msra.mxu0 0
      %2199 = vmatprep.subr.bf16.mxu0 0
      %2200 = vmatpush2.bf16.msra.mxu0 0
      %2201 = vmatprep.subr.bf16.mxu0 0
      %2202 = vmatpush2.bf16.msra.mxu0 0
      %2203 = vmatprep.subr.bf16.mxu0 0
      %2204 = vmatpush2.bf16.msra.mxu0 0
      %2205 = vmatprep.subr.bf16.mxu0 0
      %2206 = vmatpush2.bf16.msra.mxu0 0
      %2207 = vmatprep.subr.bf16.mxu0 0
      %2208 = vmatpush2.bf16.msra.mxu0 0
      %2209 = vmatprep.subr.bf16.mxu0 0
      %2210 = vmatpush2.bf16.msra.mxu0 0
      %2211 = vmatprep.mubr.bf16.mxu0 0
      %2212 = vmatmul.mubr.bf16.gmra.mxu0 %v2165
      %v2213 = vpop.f32.mrf.mxu0
      %v2214 = vadd.f32 %v2137, %v2213
      %v2215 = vpop.f32.mrf.mxu0
      %v2216 = vadd.f32 %v2137, %v2215
      %v2217 = vpop.f32.mrf.mxu0
      %v2218 = vadd.f32 %v2142, %v2217
      %v2219 = vpop.f32.mrf.mxu0
      %v2220 = vadd.f32 %v2142, %v2219
      %2221 = vmatprep.mubr.bf16.mxu0 0
      %2222 = vmatmul.mubr.bf16.gmra.mxu0 %v2168
      %v2223 = vpop.f32.mrf.mxu0
      %v2224 = vadd.f32 %v2147, %v2223
      %v2225 = vpop.f32.mrf.mxu0
      %v2226 = vadd.f32 %v2147, %v2225
      %v2227 = vpop.f32.mrf.mxu0
      %v2228 = vadd.f32 %v2152, %v2227
      %v2229 = vpop.f32.mrf.mxu0
      %v2230 = vadd.f32 %v2152, %v2229
      %2231 = vdwg.mxu0
      %2232 = vmatprep.subr.bf16.mxu0 0
      %2233 = vmatpush1.bf16.msra.mxu0 0
      %2234 = vmatprep.subr.bf16.mxu0 0
      %2235 = vmatpush1.bf16.msra.mxu0 0
      %2236 = vmatprep.subr.bf16.mxu0 0
      %2237 = vmatpush1.bf16.msra.mxu0 0
      %2238 = vmatprep.subr.bf16.mxu0 0
      %2239 = vmatpush1.bf16.msra.mxu0 0
      %2240 = vmatprep.subr.bf16.mxu0 0
      %2241 = vmatpush1.bf16.msra.mxu0 0
      %2242 = vmatprep.subr.bf16.mxu0 0
      %2243 = vmatpush1.bf16.msra.mxu0 %v2177
      %2244 = vmatprep.subr.bf16.mxu0 0
      %2245 = vmatpush1.bf16.msra.mxu0 %v2122
      %2246 = vmatprep.subr.bf16.mxu0 0
      %2247 = vmatpush1.bf16.msra.mxu0 %v2119
      %2248 = vmatprep.subr.bf16.mxu0 0
      %2249 = vmatpush2.bf16.msra.mxu0 0
      %2250 = vmatprep.subr.bf16.mxu0 0
      %2251 = vmatpush2.bf16.msra.mxu0 0
      %2252 = vmatprep.subr.bf16.mxu0 0
      %2253 = vmatpush2.bf16.msra.mxu0 0
      %2254 = vmatprep.subr.bf16.mxu0 0
      %2255 = vmatpush2.bf16.msra.mxu0 0
      %2256 = vmatprep.subr.bf16.mxu0 0
      %2257 = vmatpush2.bf16.msra.mxu0 0
      %2258 = vmatprep.subr.bf16.mxu0 0
      %2259 = vmatpush2.bf16.msra.mxu0 0
      %2260 = vmatprep.subr.bf16.mxu0 0
      %2261 = vmatpush2.bf16.msra.mxu0 0
      %2262 = vmatprep.subr.bf16.mxu0 0
      %2263 = vmatpush2.bf16.msra.mxu0 0
      %2264 = vmatprep.mubr.bf16.mxu0 0
      %2265 = vmatmul.mubr.bf16.gmra.mxu0 %v2165
      %v2266 = vpop.f32.mrf.mxu0
      %v2267 = vadd.f32 %v2137, %v2266
      %v2268 = vpop.f32.mrf.mxu0
      %v2269 = vpop.f32.mrf.mxu0
      %v2270 = vadd.f32 %v2142, %v2269
      %v2271 = vpop.f32.mrf.mxu0
      %2272 = vmatprep.mubr.bf16.mxu0 0
      %2273 = vmatmul.mubr.bf16.gmra.mxu0 %v2168
      %v2274 = vpop.f32.mrf.mxu0
      %v2275 = vadd.f32 %v2147, %v2274
      %v2276 = vpop.f32.mrf.mxu0
      %v2277 = vpop.f32.mrf.mxu0
      %v2278 = vadd.f32 %v2152, %v2277
      %v2279 = vpop.f32.mrf.mxu0
      %2280 = vdwg.mxu0
      %v2281 = vxor.u32 %v2214, 2147483648
      %v2282 = vxor.u32 %v2216, 2147483648
      %v2283 = vxor.u32 %v2267, 2147483648
      %v2284 = vxor.u32 %v2218, 2147483648
      %v2285 = vxor.u32 %v2220, 2147483648
      %v2286 = vxor.u32 %v2270, 2147483648
      %v2287 = vxor.u32 %v2224, 2147483648
      %v2288 = vxor.u32 %v2226, 2147483648
      %v2289 = vxor.u32 %v2275, 2147483648
      %v2290 = vxor.u32 %v2228, 2147483648
      %v2291 = vxor.u32 %v2230, 2147483648
      %v2292 = vxor.u32 %v2278, 2147483648
      %v2293 = vmul.f32 %v2281, 1.442695
      %v2294 = vpow.pop %v2293
      %v2295 = vmul.f32 %v2282, 1.442695
      %v2296 = vpow.pop %v2295
      %v2297 = vmul.f32 %v2283, 1.442695
      %v2298 = vpow.pop %v2297
      %v2299 = vmul.f32 %v2284, 1.442695
      %v2300 = vpow.pop %v2299
      %v2301 = vmul.f32 %v2285, 1.442695
      %v2302 = vpow.pop %v2301
      %v2303 = vmul.f32 %v2286, 1.442695
      %v2304 = vpow.pop %v2303
      %v2305 = vmul.f32 %v2287, 1.442695
      %v2306 = vpow.pop %v2305
      %v2307 = vmul.f32 %v2288, 1.442695
      %v2308 = vpow.pop %v2307
      %v2309 = vmul.f32 %v2289, 1.442695
      %v2310 = vpow.pop %v2309
      %v2311 = vmul.f32 %v2290, 1.442695
      %v2312 = vpow.pop %v2311
      %v2313 = vmul.f32 %v2291, 1.442695
      %v2314 = vpow.pop %v2313
      %v2315 = vmul.f32 %v2292, 1.442695
      %v2316 = vpow.pop %v2315
      %v2317 = vadd.f32 %v2294, 1.0
      %v2318 = vadd.f32 %v2296, 1.0
      %v2319 = vadd.f32 %v2298, 1.0
      %v2320 = vadd.f32 %v2300, 1.0
      %v2321 = vadd.f32 %v2302, 1.0
      %v2322 = vadd.f32 %v2304, 1.0
      %v2323 = vadd.f32 %v2306, 1.0
      %v2324 = vadd.f32 %v2308, 1.0
      %v2325 = vadd.f32 %v2310, 1.0
      %v2326 = vadd.f32 %v2312, 1.0
      %v2327 = vadd.f32 %v2314, 1.0
      %v2328 = vadd.f32 %v2316, 1.0
      %v2329 = vrcp.pop %v2317
      %v2330 = vmul.f32 1.0, %v2329
      %v2331 = vrcp.pop %v2318
      %v2332 = vmul.f32 1.0, %v2331
      %v2333 = vrcp.pop %v2319
      %v2334 = vmul.f32 1.0, %v2333
      %v2335 = vrcp.pop %v2320
      %v2336 = vmul.f32 1.0, %v2335
      %v2337 = vrcp.pop %v2321
      %v2338 = vmul.f32 1.0, %v2337
      %v2339 = vrcp.pop %v2322
      %v2340 = vmul.f32 1.0, %v2339
      %v2341 = vrcp.pop %v2323
      %v2342 = vmul.f32 1.0, %v2341
      %v2343 = vrcp.pop %v2324
      %v2344 = vmul.f32 1.0, %v2343
      %v2345 = vrcp.pop %v2325
      %v2346 = vmul.f32 1.0, %v2345
      %v2347 = vrcp.pop %v2326
      %v2348 = vmul.f32 1.0, %v2347
      %v2349 = vrcp.pop %v2327
      %v2350 = vmul.f32 1.0, %v2349
      %v2351 = vrcp.pop %v2328
      %v2352 = vmul.f32 1.0, %v2351
      %v2353 = vmul.f32 %v2214, %v2330
      %v2354 = vmul.f32 %v2216, %v2332
      %v2355 = vmul.f32 %v2267, %v2334
      %v2356 = vmul.f32 %v2218, %v2336
      %v2357 = vmul.f32 %v2220, %v2338
      %v2358 = vmul.f32 %v2270, %v2340
      %v2359 = vmul.f32 %v2224, %v2342
      %v2360 = vmul.f32 %v2226, %v2344
      %v2361 = vmul.f32 %v2275, %v2346
      %v2362 = vmul.f32 %v2228, %v2348
      %v2363 = vmul.f32 %v2230, %v2350
      %v2364 = vmul.f32 %v2278, %v2352
      %v2365 = vld [vmem:[%s3] sm:$0xf]
      %v2366 = vld [vmem:[%s3 + $0x4] sm:$0xf]
      %v2367 = vpack.c.bf16 %v2356, %v2353
      %v2368 = vpack.c.bf16 %v2357, %v2354
      %v2369 = vpack.c.bf16 %v2358, %v2355
      %v2370 = vpack.c.bf16 %v2362, %v2359
      %v2371 = vpack.c.bf16 %v2363, %v2360
      %v2372 = vpack.c.bf16 %v2364, %v2361
      %v2373 = vld [vmem:[%s4] sm:$0xff]
      %v2374 = vld [vmem:[%s4 + $0x8] sm:$0xff]
      %2376 = vset.pattern.permute.xlu0 0
      %2377 = vperm.xlu0 %2376, %v2373
      %v2378 = vpop.permute.xlu0 %2377
      %2381 = vset.pattern.permute.xlu0 0
      %2382 = vperm.xlu0 %2381, %v2374
      %v2383 = vpop.permute.xlu0 %2382
      %v2387 = vunpack.c.l.b16 %v2365
      %v2388 = vunpack.c.l.b16 %v2366
      %v2389 = vpack.c.b16 %v2388, %v2387
      %v2391 = vsel %vm679, %v2389, 0
      %2393 = vmatprep.subr.bf16.mxu0 0
      %2394 = vmatpush1.bf16.msra.mxu0 0
      %2395 = vmatprep.subr.bf16.mxu0 0
      %2396 = vmatpush1.bf16.msra.mxu0 0
      %2397 = vmatprep.subr.bf16.mxu0 0
      %2398 = vmatpush1.bf16.msra.mxu0 0
      %2399 = vmatprep.subr.bf16.mxu0 0
      %2400 = vmatpush1.bf16.msra.mxu0 0
      %2401 = vmatprep.subr.bf16.mxu0 0
      %2402 = vmatpush1.bf16.msra.mxu0 0
      %2403 = vmatprep.subr.bf16.mxu0 0
      %2404 = vmatpush1.bf16.msra.mxu0 0
      %2405 = vmatprep.subr.bf16.mxu0 %v2371
      %2406 = vmatpush1.bf16.msra.mxu0 %v2370
      %2407 = vmatprep.subr.bf16.mxu0 %v2368
      %2408 = vmatpush1.bf16.msra.mxu0 %v2367
      %2409 = vmatprep.subr.bf16.mxu0 0
      %2410 = vmatpush2.bf16.msra.mxu0 0
      %2411 = vmatprep.subr.bf16.mxu0 0
      %2412 = vmatpush2.bf16.msra.mxu0 0
      %2413 = vmatprep.subr.bf16.mxu0 0
      %2414 = vmatpush2.bf16.msra.mxu0 0
      %2415 = vmatprep.subr.bf16.mxu0 0
      %2416 = vmatpush2.bf16.msra.mxu0 0
      %2417 = vmatprep.subr.bf16.mxu0 0
      %2418 = vmatpush2.bf16.msra.mxu0 0
      %2419 = vmatprep.subr.bf16.mxu0 0
      %2420 = vmatpush2.bf16.msra.mxu0 0
      %2421 = vmatprep.subr.bf16.mxu0 0
      %2422 = vmatpush2.bf16.msra.mxu0 0
      %2423 = vmatprep.subr.bf16.mxu0 0
      %2424 = vmatpush2.bf16.msra.mxu0 0
      %2425 = vmatprep.mubr.bf16.mxu0 0
      %2426 = vmatmul.mubr.bf16.gmra.mxu0 %v2391
      %v2427 = vpop.f32.mrf.mxu0
      %v2428 = vadd.f32 %v2378, %v2427
      %v2429 = vpop.f32.mrf.mxu0
      %v2430 = vadd.f32 %v2378, %v2429
      %v2431 = vpop.f32.mrf.mxu0
      %v2432 = vadd.f32 %v2383, %v2431
      %v2433 = vpop.f32.mrf.mxu0
      %v2434 = vadd.f32 %v2383, %v2433
      %2435 = vdwg.mxu0
      %2436 = vmatprep.subr.bf16.mxu0 0
      %2437 = vmatpush1.bf16.msra.mxu0 0
      %2438 = vmatprep.subr.bf16.mxu0 0
      %2439 = vmatpush1.bf16.msra.mxu0 0
      %2440 = vmatprep.subr.bf16.mxu0 0
      %2441 = vmatpush1.bf16.msra.mxu0 0
      %2442 = vmatprep.subr.bf16.mxu0 0
      %2443 = vmatpush1.bf16.msra.mxu0 0
      %2444 = vmatprep.subr.bf16.mxu0 0
      %2445 = vmatpush1.bf16.msra.mxu0 0
      %2446 = vmatprep.subr.bf16.mxu0 0
      %2447 = vmatpush1.bf16.msra.mxu0 0
      %2448 = vmatprep.subr.bf16.mxu0 0
      %2449 = vmatpush1.bf16.msra.mxu0 %v2372
      %2450 = vmatprep.subr.bf16.mxu0 0
      %2451 = vmatpush1.bf16.msra.mxu0 %v2369
      %2452 = vmatprep.subr.bf16.mxu0 0
      %2453 = vmatpush2.bf16.msra.mxu0 0
      %2454 = vmatprep.subr.bf16.mxu0 0
      %2455 = vmatpush2.bf16.msra.mxu0 0
      %2456 = vmatprep.subr.bf16.mxu0 0
      %2457 = vmatpush2.bf16.msra.mxu0 0
      %2458 = vmatprep.subr.bf16.mxu0 0
      %2459 = vmatpush2.bf16.msra.mxu0 0
      %2460 = vmatprep.subr.bf16.mxu0 0
      %2461 = vmatpush2.bf16.msra.mxu0 0
      %2462 = vmatprep.subr.bf16.mxu0 0
      %2463 = vmatpush2.bf16.msra.mxu0 0
      %2464 = vmatprep.subr.bf16.mxu0 0
      %2465 = vmatpush2.bf16.msra.mxu0 0
      %2466 = vmatprep.subr.bf16.mxu0 0
      %2467 = vmatpush2.bf16.msra.mxu0 0
      %2468 = vmatprep.mubr.bf16.mxu0 0
      %2469 = vmatmul.mubr.bf16.gmra.mxu0 %v2391
      %v2470 = vpop.f32.mrf.mxu0
      %v2471 = vadd.f32 %v2378, %v2470
      %v2472 = vpop.f32.mrf.mxu0
      %v2473 = vpop.f32.mrf.mxu0
      %v2474 = vadd.f32 %v2383, %v2473
      %v2475 = vpop.f32.mrf.mxu0
      %2476 = vdwg.mxu0
      %v2477 = vmax.f32 %v2432, -30.0
      %v2478 = vmax.f32 %v2434, -30.0
      %v2479 = vmax.f32 %v2474, -30.0
      %v2480 = vmin.f32 %v2477, 20.0
      %v2481 = vmin.f32 %v2478, 20.0
      %v2482 = vmin.f32 %v2479, 20.0
      %v2483 = vmul.f32 %v2480, 0.5
      %v2484 = vmul.f32 %v2481, 0.5
      %v2485 = vmul.f32 %v2482, 0.5
      %v2486 = vmul.f32 %v2483, 1.442695
      %v2487 = vpow.pop %v2486
      %v2488 = vmul.f32 %v2484, 1.442695
      %v2489 = vpow.pop %v2488
      %v2490 = vmul.f32 %v2485, 1.442695
      %v2491 = vpow.pop %v2490
      %s2492 = scalar_lea.vmem %s276, 36
      %v2493 = vld [vmem:[%s2492] sm:$0xff]
      %v2494 = vld [vmem:[%s2492 + $0x8] sm:$0xf]
      %v2495 = vunpack.c.l.bf16 %v2493
      %v2496 = vunpack.c.h.bf16 %v2493
      %v2497 = vunpack.c.l.bf16 %v2494
      %v2498 = vmul.f32 %v2495, %v2487
      %v2499 = vmul.f32 %v2496, %v2489
      %v2500 = vmul.f32 %v2497, %v2491
      %v2501 = vadd.f32 %v2428, %v2498
      %v2502 = vadd.f32 %v2430, %v2499
      %v2503 = vadd.f32 %v2471, %v2500
      %2505 = vrot.lane.b32.xlu0 %v2501, 126
      %v2506 = vpop.permute.xlu0 %2505
      %2508 = vrot.lane.b32.xlu0 %v2501, 124
      %v2509 = vpop.permute.xlu0 %2508
      %2511 = vrot.lane.b32.xlu0 %v2501, 122
      %v2512 = vpop.permute.xlu0 %2511
      %2514 = vrot.lane.b32.xlu0 %v2501, 120
      %v2515 = vpop.permute.xlu0 %2514
      %2517 = vrot.lane.b32.xlu0 %v2501, 118
      %v2518 = vpop.permute.xlu0 %2517
      %2520 = vrot.lane.b32.xlu0 %v2501, 116
      %v2521 = vpop.permute.xlu0 %2520
      %2524 = vrot.lane.b32.xlu0 %v2501, 114
      %v2525 = vpop.permute.xlu0 %2524
      %2526 = vrot.lane.b32.xlu0 %v2502, 114
      %v2527 = vpop.permute.xlu0 %2526
      %v2528 = vsel %vm817, %v2525, %v2527
      %2530 = vrot.lane.b32.xlu0 %v2502, 112
      %v2531 = vpop.permute.xlu0 %2530
      %2533 = vrot.lane.b32.xlu0 %v2502, 110
      %v2534 = vpop.permute.xlu0 %2533
      %2536 = vrot.lane.b32.xlu0 %v2502, 108
      %v2537 = vpop.permute.xlu0 %2536
      %2539 = vrot.lane.b32.xlu0 %v2502, 106
      %v2540 = vpop.permute.xlu0 %2539
      %2542 = vrot.lane.b32.xlu0 %v2502, 104
      %v2543 = vpop.permute.xlu0 %2542
      %2545 = vrot.lane.b32.xlu0 %v2502, 102
      %v2546 = vpop.permute.xlu0 %2545
      %2549 = vrot.lane.b32.xlu0 %v2502, 100
      %v2550 = vpop.permute.xlu0 %2549
      %2551 = vrot.lane.b32.xlu0 %v2503, 100
      %v2552 = vpop.permute.xlu0 %2551
      %v2553 = vsel %vm843, %v2550, %v2552
      %2555 = vrot.lane.b32.xlu0 %v2503, 98
      %v2556 = vpop.permute.xlu0 %2555
      %v2558 = vsel %vm849, %v2501, %v2506
      %v2559 = vsel %vm679, %v2558, %v2509
      %v2560 = vsel %vm852, %v2559, %v2512
      %v2561 = vsel %vm854, %v2560, %v2515
      %v2562 = vsel %vm856, %v2561, %v2518
      %v2563 = vsel %vm858, %v2562, %v2521
      %v2564 = vsel %vm860, %v2563, %v2528
      %v2565 = vsel %vm849, %v2531, %v2534
      %v2566 = vsel %vm679, %v2565, %v2537
      %v2567 = vsel %vm852, %v2566, %v2540
      %v2568 = vsel %vm854, %v2567, %v2543
      %v2569 = vsel %vm856, %v2568, %v2546
      %v2570 = vsel %vm858, %v2569, %v2553
      %v2571 = vsel %vm860, %v2570, %v2556
      %s2572 = scalar_lea.vmem %s283, 48
      %2573 = vst [vmem:[%s2572] sm:$0xff] %v2564
      %2574 = vst [vmem:[%s2572 + $0x8] sm:$0xff] %v2571
      %s2575 = smul.u32 4, %s17
      %p2576 = scmp.lt.s32.totalorder %s2575, 7
      %s2577 = scalar_select %p2576, %s2575, 7
      %s2578 = smul.addr %s2577, 2
      %s2579 = smul.addr %s2578, 8
      %s2580 = scalar_lea.vmem %s6, %s2579
      // Predicated region
      $region45: #{stage1_forward.1} parent=43 // pred_check
        %p2581 = pneg %p171
      $region46: #{stage1_forward.1} parent=43 // pred_check_branch
        %2583 = sbr.rel (%p2581) target = $region48
      $region47: #{stage1_forward.1} parent=43 // pred_region
        %s2584 = smul.u32 4, %s17
      $region48: #{stage1_forward.1} parent=43 // pred_fallthru
        _
    $region44: #{stage1_forward.1} parent=5 // pred_fallthru
      _
    %p2585 = scmp.le.s32.totalorder 2, %s12
    // Predicated region
    $region49: #{stage1_forward.1} parent=5 // pred_check
      %p2586 = pneg %p2585
    $region50: #{stage1_forward.1} parent=5 // pred_check_branch
      %2588 = sbr.rel (%p2586) target = $region52
    $region51: #{stage1_forward.1} parent=5 // pred_region
      %s2589 = ssub.s32 %s12, 2
      // Predicated region
      $region53: #{stage1_forward.1} parent=51 // pred_check
        %p2590 = pneg %p177
      $region54: #{stage1_forward.1} parent=51 // pred_check_branch
        %2592 = sbr.rel (%p2590) target = $region56
      $region55: #{stage1_forward.1} parent=51 // pred_region
        %s2593 = smul.u32 4, %s18
        %p2594 = scmp.lt.s32.totalorder %s2593, 7
        %s2595 = scalar_select %p2594, %s2593, 7
        %s2596 = smul.addr %s2595, 2
        %s2597 = smul.addr %s2596, 8
        %s2598 = scalar_lea.vmem %s6, %s2597
      $region56: #{stage1_forward.1} parent=51 // pred_fallthru
        _
    $region52: #{stage1_forward.1} parent=5 // pred_fallthru
      _
  $region6: #{stage1_forward.1} parent=0 // loop_footer
    %s16 = sadd.s32 1, %s12
  $region7: #{stage1_forward.1} parent=0 // loop_footer_branch
    %11 = sbr.rel target = $region3
  $region8: #{stage1_forward.1} parent=0 // loop_exit
    _

</llo_original>
